<compile_context>
chip_gen: v7x
topology: tpu7x:2x2x1
jax: 0.10.0
libtpu: 0.0.40
codegen_flags: <defaults>
</compile_context>

<pallas_src>
import functools

import jax
import jax.numpy as jnp
from jax.experimental import pallas as pl
from jax.experimental.pallas import tpu as pltpu


def _round_up(a, b):
    return ((a + b - 1) // b) * b


def _round_down(a, b):
    return (a // b) * b


def _vmem_capacity_bytes():
    """Physical VMEM per TensorCore (128 MiB on v5e/v6e, 64 MiB on v7x)."""
    try:
        cap = getattr(pltpu.get_tpu_info(), "vmem_capacity_bytes", None)
        if cap:
            return int(cap)
    except Exception:
        pass
    return 64 * 1024 * 1024  # unknown -> assume the smaller (v7x-safe) size


def _vmem_bytes_resident(tm, h_pad, d4_pad, act_bytes, w_bytes, weight_bufs):
    """VMEM footprint estimate for the resident-weights path (with margin for
    the f32/bf16 intermediates Mosaic materializes: h, gelu(h), h_mm cast,
    x_f32 / y / centered copies)."""
    weights = 2 * h_pad * d4_pad * w_bytes * weight_bufs          # W1^T + W2^T
    small = (d4_pad + 3 * h_pad) * 4 * weight_bufs                # b1, b2, gamma, beta
    io_tiles = 2 * 2 * tm * h_pad * act_bytes                     # x + out, double-buffered
    scratch = 2 * tm * d4_pad * 4 + tm * d4_pad * w_bytes + 4 * tm * h_pad * 4
    return weights + small + io_tiles + int(scratch * 1.25)


def _vmem_bytes_d4(tm, h_pad, td4, act_bytes, w_bytes):
    """VMEM footprint estimate for the d4-streaming path."""
    wpanels = 2 * 2 * h_pad * td4 * w_bytes                       # W1/W2 panels, dbl-buffered
    small = 2 * 2 * td4 * 4 + 3 * 2 * h_pad * 4                   # b1 panels, b2/gamma/beta
    io_tiles = 2 * 2 * tm * h_pad * act_bytes                     # x + out, double-buffered
    acc = tm * h_pad * 4                                          # f32 accumulator scratch
    scratch = 2 * tm * td4 * 4 + tm * td4 * w_bytes + 4 * tm * h_pad * 4
    return wpanels + small + io_tiles + acc + int(scratch * 1.25)


def _choose_tm(m, sub, budget, footprint_fn):
    """Token-tile size: prefer a divisor of m (skips the token-axis HBM pad and
    the output slice), near the ~512-row sweet spot, with at least
    min(4, m // sub) grid steps so the v7x megacore gets >=2 steps per core."""
    req_steps = min(4, max(1, m // sub))
    upper = min(512, m)
    if m % sub == 0 and upper >= sub:
        for cand in range(_round_down(upper, sub), sub - 1, -sub):
            if m % cand != 0 or m // cand < req_steps:
                continue
            if footprint_fn(cand) <= budget:
                return cand
    # Fallback: pad the token axis; shrink until the footprint fits.
    tm = min(512, _round_up(m, sub))
    if req_steps > 1:
        tm = min(tm, max(sub, _round_up((m + req_steps - 1) // req_steps, sub)))
    while tm > sub and footprint_fn(tm) > budget:
        tm = max(sub, (tm // 2 // sub) * sub)
    return tm


def _choose_td4(d4_pad, h_pad, w_bytes, budget):
    """Largest multiple-of-128 divisor of d4_pad whose streamed, double-buffered
    W1/W2 panels take at most ~1/3 of the VMEM budget."""
    for c in range(d4_pad, 127, -128):
        if d4_pad % c != 0:
            continue
        if 2 * 2 * h_pad * c * w_bytes <= budget // 3:
            return c
    return 128


def _gelu(h, approximate):
    if approximate:
        # tanh form runs on the EUP slot (otherwise idle here); ~1e-3 deviation
        # from torch's exact erf GELU.
        c0 = jnp.float32(0.7978845608028654)   # sqrt(2/pi)
        c1 = jnp.float32(0.044715)
        return 0.5 * h * (1.0 + jnp.tanh(c0 * (h + c1 * h * h * h)))
    return 0.5 * h * (1.0 + jax.lax.erf(h * jnp.float32(0.7071067811865476)))


def _layernorm(y, gamma, beta, h_valid, eps):
    # One-pass E[y], E[y^2].  Relies on pad columns of y being exactly zero
    # (zero-padded x / weights / biases / gamma / beta), so summing over h_pad
    # and dividing by h_valid gives the true moments over the valid columns.
    inv_h = jnp.float32(1.0 / h_valid)
    mean = jnp.sum(y, axis=-1, keepdims=True) * inv_h
    msq = jnp.sum(y * y, axis=-1, keepdims=True) * inv_h
    var = jnp.maximum(msq - mean * mean, 0.0)
    return (y - mean) * jax.lax.rsqrt(var + jnp.float32(eps)) * gamma + beta


def _ffn_kernel(x_ref, w1_ref, b1_ref, w2_ref, b2_ref, g_ref, beta_ref, o_ref,
                *, eps, h_valid, approximate_gelu):
    # Resident-weights path.
    # x_ref: (tm, Hp)  w1_ref: (Hp, 4Hp)  b1_ref: (1, 4Hp)
    # w2_ref: (4Hp, Hp)  b2_ref/g_ref/beta_ref: (1, Hp)
    x = x_ref[...]
    x_mm = x if x.dtype == w1_ref.dtype else x.astype(w1_ref.dtype)
    h = jnp.dot(x_mm, w1_ref[...], preferred_element_type=jnp.float32) + b1_ref[...]
    h = _gelu(h, approximate_gelu)          # first dropout = identity (eval mode)
    h_mm = h if h.dtype == w2_ref.dtype else h.astype(w2_ref.dtype)
    y = jnp.dot(h_mm, w2_ref[...], preferred_element_type=jnp.float32)
    y = y + b2_ref[...] + x.astype(jnp.float32)   # second dropout = identity + residual
    y = _layernorm(y, g_ref[...], beta_ref[...], h_valid, eps)
    o_ref[...] = y.astype(o_ref.dtype)


def _ffn_kernel_d4(x_ref, w1_ref, b1_ref, w2_ref, b2_ref, g_ref, beta_ref, o_ref,
                   acc_ref, *, eps, h_valid, approximate_gelu):
    # d4-streaming path: grid = (token tiles, 4H panels); 4H is a reduction
    # axis for the second matmul, accumulated into acc_ref (f32 VMEM scratch).
    j = pl.program_id(1)

    @pl.when(j == 0)
    def _():
        acc_ref[...] = jnp.zeros_like(acc_ref)

    x = x_ref[...]
    x_mm = x if x.dtype == w1_ref.dtype else x.astype(w1_ref.dtype)
    h = jnp.dot(x_mm, w1_ref[...], preferred_element_type=jnp.float32) + b1_ref[...]
    h = _gelu(h, approximate_gelu)
    h_mm = h if h.dtype == w2_ref.dtype else h.astype(w2_ref.dtype)
    acc_ref[...] += jnp.dot(h_mm, w2_ref[...], preferred_element_type=jnp.float32)

    @pl.when(j == pl.num_programs(1) - 1)
    def _():
        y = acc_ref[...] + b2_ref[...] + x.astype(jnp.float32)
        y = _layernorm(y, g_ref[...], beta_ref[...], h_valid, eps)
        o_ref[...] = y.astype(o_ref.dtype)


def prepare_ffn_params(w1, b1, w2, b2, gamma, beta, *, weight_dtype=None):
    """One-time parameter preparation (keep OUT of the per-call hot path):
    transpose torch-layout weights to [in, out], zero-pad hidden/4*hidden axes
    to multiples of 128 lanes, optionally convert weights to bf16.
    w1: [4H, H], w2: [H, 4H] (torch nn.Linear layout).

    Recommendation: weight_dtype=jnp.bfloat16 on v5e (bf16-native MXU; f32
    matmuls decompose into multiple passes) unless f32 is strictly required."""
    d4, h = w1.shape
    assert w2.shape == (h, d4)
    h_pad = _round_up(h, 128)
    d4_pad = _round_up(d4, 128)
    wd = jnp.dtype(weight_dtype) if weight_dtype is not None else jnp.dtype(w1.dtype)

    w1_t = jnp.pad(jnp.transpose(w1), ((0, h_pad - h), (0, d4_pad - d4))).astype(wd)
    w2_t = jnp.pad(jnp.transpose(w2), ((0, d4_pad - d4), (0, h_pad - h))).astype(wd)
    b1_p = jnp.pad(b1.astype(jnp.float32).reshape(1, d4), ((0, 0), (0, d4_pad - d4)))
    b2_p = jnp.pad(b2.astype(jnp.float32).reshape(1, h), ((0, 0), (0, h_pad - h)))
    g_p = jnp.pad(gamma.astype(jnp.float32).reshape(1, h), ((0, 0), (0, h_pad - h)))
    be_p = jnp.pad(beta.astype(jnp.float32).reshape(1, h), ((0, 0), (0, h_pad - h)))

    return {"h": h, "d4": d4, "h_pad": h_pad, "d4_pad": d4_pad,
            "w1_t": w1_t, "b1": b1_p, "w2_t": w2_t, "b2": b2_p,
            "gamma": g_p, "beta": be_p}


def positionwise_feed_forward(x, params, *, eps=1e-6, tm=None, td4=None,
                              approximate_gelu=True, single_buffer_weights=True,
                              vmem_budget_bytes=None):
    """x: [B, L, H].  `params` from prepare_ffn_params.

    approximate_gelu=True (default) uses the tanh GELU (EUP-friendly); pass
    False to bit-match torch.nn.functional.gelu (exact erf)."""
    B, L, H = x.shape
    assert H == params["h"]
    h_pad, d4_pad = params["h_pad"], params["d4_pad"]
    M = B * L

    act_bytes = jnp.dtype(x.dtype).itemsize
    w_bytes = jnp.dtype(params["w1_t"].dtype).itemsize
    sub = 8 if act_bytes >= 4 else 16            # sublane packing: f32 -> 8, bf16 -> 16
    weight_bufs = 1 if single_buffer_weights else 2

    # Generation-aware VMEM budget: ~80% of physical per-TC VMEM
    # (v7x: ~51 MiB of 64; v5e/v6e: ~102 MiB of 128), leaving headroom for
    # Mosaic internal scratch.
    capacity = _vmem_capacity_bytes()
    if vmem_budget_bytes is None:
        vmem_budget_bytes = int(capacity * 0.8)
    budget = int(min(vmem_budget_bytes, int(capacity * 0.85)))
    vmem_cap = int(capacity * 0.8)

    # Choose the execution path: keep weights resident unless they approach
    # half the budget, in which case stream 4H panels instead of shrinking tm.
    resident_w_bytes = 2 * h_pad * d4_pad * w_bytes * weight_bufs
    use_d4 = (td4 is not None) or (resident_w_bytes > budget // 2)

    if use_d4:
        if td4 is None:
            td4 = _choose_td4(d4_pad, h_pad, w_bytes, budget)
        assert td4 % 128 == 0 and d4_pad % td4 == 0, "td4 must be a 128-multiple divisor of d4_pad"
        footprint = lambda t: _vmem_bytes_d4(t, h_pad, td4, act_bytes, w_bytes)
    else:
        footprint = lambda t: _vmem_bytes_resident(t, h_pad, d4_pad, act_bytes,
                                                   w_bytes, weight_bufs)

    if tm is None:
        tm = _choose_tm(M, sub, budget, footprint)
    tm = max(sub, _round_up(tm, sub))

    m_pad = _round_up(M, tm)
    x2d = x.reshape(M, H)
    needs_pad = (m_pad, h_pad) != (M, H)
    if needs_pad:
        # Lane-axis pad is unavoidable when H % 128 != 0; the token-axis pad is
        # avoided whenever _choose_tm finds a divisor of M (the common case).
        x2d = jnp.pad(x2d, ((0, m_pad - M), (0, h_pad - H)))

    kernel_kwargs = dict(eps=eps, h_valid=H, approximate_gelu=approximate_gelu)

    if use_d4:
        kernel = functools.partial(_ffn_kernel_d4, **kernel_kwargs)
        need = footprint(tm)
        vmem_limit = int(min(vmem_cap, max(32 * 1024 * 1024, int(need * 1.4))))
        grid = (m_pad // tm, d4_pad // td4)
        out2d = pl.pallas_call(
            kernel,
            out_shape=jax.ShapeDtypeStruct((m_pad, h_pad), x.dtype),
            grid_spec=pltpu.PrefetchScalarGridSpec(
                num_scalar_prefetch=0,
                grid=grid,
                in_specs=[
                    pl.BlockSpec((tm, h_pad), lambda i, j: (i, 0)),      # x tile (resident over j)
                    pl.BlockSpec((h_pad, td4), lambda i, j: (0, j)),     # W1^T column panel
                    pl.BlockSpec((1, td4), lambda i, j: (0, j)),         # b1 panel
                    pl.BlockSpec((td4, h_pad), lambda i, j: (j, 0)),     # W2^T row panel
                    pl.BlockSpec((1, h_pad), lambda i, j: (0, 0)),       # b2
                    pl.BlockSpec((1, h_pad), lambda i, j: (0, 0)),       # gamma
                    pl.BlockSpec((1, h_pad), lambda i, j: (0, 0)),       # beta
                ],
                out_specs=pl.BlockSpec((tm, h_pad), lambda i, j: (i, 0)),
                scratch_shapes=[pltpu.VMEM((tm, h_pad), jnp.float32)],
            ),
            compiler_params=pltpu.CompilerParams(
                dimension_semantics=("parallel", "arbitrary"),
                vmem_limit_bytes=vmem_limit),
        )(x2d, params["w1_t"], params["b1"], params["w2_t"], params["b2"],
          params["gamma"], params["beta"])
    else:
        kernel = functools.partial(_ffn_kernel, **kernel_kwargs)
        grid = (m_pad // tm,)

        def _run(single_buf):
            # Resident operands (constant index_map) do not need double buffering.
            resident = dict(pipeline_mode=pl.Buffered(1)) if single_buf else {}
            bufs = 1 if single_buf else 2
            need = _vmem_bytes_resident(tm, h_pad, d4_pad, act_bytes, w_bytes, bufs)
            vmem_limit = int(min(vmem_cap, max(32 * 1024 * 1024, int(need * 1.4))))
            in_specs = [
                pl.BlockSpec((tm, h_pad), lambda i: (i, 0)),                   # x tile
                pl.BlockSpec((h_pad, d4_pad), lambda i: (0, 0), **resident),   # W1^T
                pl.BlockSpec((1, d4_pad), lambda i: (0, 0), **resident),       # b1
                pl.BlockSpec((d4_pad, h_pad), lambda i: (0, 0), **resident),   # W2^T
                pl.BlockSpec((1, h_pad), lambda i: (0, 0), **resident),        # b2
                pl.BlockSpec((1, h_pad), lambda i: (0, 0), **resident),        # gamma
                pl.BlockSpec((1, h_pad), lambda i: (0, 0), **resident),        # beta
            ]
            return pl.pallas_call(
                kernel,
                out_shape=jax.ShapeDtypeStruct((m_pad, h_pad), x.dtype),
                grid_spec=pltpu.PrefetchScalarGridSpec(
                    num_scalar_prefetch=0,
                    grid=grid,
                    in_specs=in_specs,
                    out_specs=pl.BlockSpec((tm, h_pad), lambda i: (i, 0)),
                ),
                compiler_params=pltpu.CompilerParams(
                    dimension_semantics=("parallel",),
                    vmem_limit_bytes=vmem_limit),
            )(x2d, params["w1_t"], params["b1"], params["w2_t"], params["b2"],
              params["gamma"], params["beta"])

        if single_buffer_weights:
            try:
                out2d = _run(True)
            except Exception:
                # Fall back to default double-buffering if pl.Buffered(1) is not
                # supported by the installed Pallas build.
                out2d = _run(False)
        else:
            out2d = _run(False)

    if needs_pad:
        out2d = out2d[:M, :H]
    return out2d.reshape(B, L, H)


def _reference(x, w1, b1, w2, b2, gamma, beta, eps=1e-6):
    # Pure-JAX reference mirroring the PyTorch forward (dropout = identity).
    h = jnp.einsum('blh,oh->blo', x, w1) + b1
    h = 0.5 * h * (1.0 + jax.lax.erf(h / jnp.sqrt(2.0)))
    y = jnp.einsum('blo,ho->blh', h, w2) + b2
    y = y + x
    mean = jnp.mean(y, axis=-1, keepdims=True)
    var = jnp.mean((y - mean) ** 2, axis=-1, keepdims=True)
    return (y - mean) / jnp.sqrt(var + eps) * gamma + beta


if __name__ == "__main__":
    B, L, H = 2, 8, 32          # batch=2, seq=8, hidden_units=32
    H4 = 4 * H

    key = jax.random.PRNGKey(0)
    kx, k1, kb1, k2, kb2 = jax.random.split(key, 5)

    x = jax.random.normal(kx, (B, L, H), dtype=jnp.float32)
    # Torch nn.Linear layout: weight [out, in].
    w1 = 0.02 * jax.random.normal(k1, (H4, H), dtype=jnp.float32)
    b1 = 0.02 * jax.random.normal(kb1, (H4,), dtype=jnp.float32)
    w2 = 0.02 * jax.random.normal(k2, (H, H4), dtype=jnp.float32)
    b2 = 0.02 * jax.random.normal(kb2, (H,), dtype=jnp.float32)
    gamma = jnp.ones((H,), dtype=jnp.float32)   # LayerNorm affine defaults
    beta = jnp.zeros((H,), dtype=jnp.float32)

    ref = _reference(x, w1, b1, w2, b2, gamma, beta)

    # TODO(synk): dropout is stochastic at train time; inference (identity) is implemented.

    # (a) f32 weights / f32 activations, exact erf GELU: matches torch forward.
    params_f32 = prepare_ffn_params(w1, b1, w2, b2, gamma, beta)
    out = jax.block_until_ready(
        positionwise_feed_forward(x, params_f32, approximate_gelu=False))
    assert out.shape == (B, L, H)
    assert jnp.allclose(out, ref, atol=1e-4, rtol=1e-4)

    # (b) bf16 weights + bf16 activations, default tanh GELU (recommended fast
    #     path, esp. on v5e): native bf16 MXU, looser tolerance.
    params_bf16 = prepare_ffn_params(w1, b1, w2, b2, gamma, beta,
                                     weight_dtype=jnp.bfloat16)
    out_bf16 = jax.block_until_ready(
        positionwise_feed_forward(x.astype(jnp.bfloat16), params_bf16))
    assert out_bf16.shape == (B, L, H) and out_bf16.dtype == jnp.bfloat16
    assert float(jnp.max(jnp.abs(out_bf16.astype(jnp.float32) - ref))) < 0.1

    # (c) H=128 config exercising the d4-streaming accumulator path (td4 forced
    #     so the reduction over 4H panels is actually executed and checked).
    H2 = 128
    H24 = 4 * H2
    key2 = jax.random.PRNGKey(1)
    kx2, k12, kb12, k22, kb22 = jax.random.split(key2, 5)
    x2 = jax.random.normal(kx2, (B, L, H2), dtype=jnp.float32)
    w1b = 0.02 * jax.random.normal(k12, (H24, H2), dtype=jnp.float32)
    b1b = 0.02 * jax.random.normal(kb12, (H24,), dtype=jnp.float32)
    w2b = 0.02 * jax.random.normal(k22, (H2, H24), dtype=jnp.float32)
    b2b = 0.02 * jax.random.normal(kb22, (H2,), dtype=jnp.float32)
    g2 = jnp.ones((H2,), dtype=jnp.float32)
    be2 = jnp.zeros((H2,), dtype=jnp.float32)

    ref2 = _reference(x2, w1b, b1b, w2b, b2b, g2, be2)
    params2 = prepare_ffn_params(w1b, b1b, w2b, b2b, g2, be2)
    out2 = jax.block_until_ready(
        positionwise_feed_forward(x2, params2, approximate_gelu=False, td4=128))
    assert out2.shape == (B, L, H2)
    assert jnp.allclose(out2, ref2, atol=2e-4, rtol=2e-4)

    print("KERNEL_OK")
</pallas_src>

<mosaic_0001>
module attributes {stable_mosaic.version = 11 : i64} {
  func.func @_ffn_kernel(%arg0: i32, %arg1: memref<8x128xf32, #tpu.memory_space<vmem>>, %arg2: memref<128x128xf32, #tpu.memory_space<vmem>>, %arg3: memref<1x128xf32, #tpu.memory_space<vmem>>, %arg4: memref<128x128xf32, #tpu.memory_space<vmem>>, %arg5: memref<1x128xf32, #tpu.memory_space<vmem>>, %arg6: memref<1x128xf32, #tpu.memory_space<vmem>>, %arg7: memref<1x128xf32, #tpu.memory_space<vmem>>, %arg8: memref<8x128xf32, #tpu.memory_space<vmem>>) attributes {dimension_semantics = [#tpu.dimension_semantics<parallel>], iteration_bounds = array<i64: 2>, scalar_prefetch = 0 : i64, scratch_operands = 0 : i64, tpu.core_type = #tpu.core_type<tc>, window_params = [{transform_indices = @transform_0, window_bounds = array<i64: 8, 128>}, {pipeline_mode = #tpu.pipeline_mode<synchronous>, transform_indices = @transform_1, window_bounds = array<i64: 128, 128>}, {pipeline_mode = #tpu.pipeline_mode<synchronous>, transform_indices = @transform_2, window_bounds = array<i64: 1, 128>}, {pipeline_mode = #tpu.pipeline_mode<synchronous>, transform_indices = @transform_3, window_bounds = array<i64: 128, 128>}, {pipeline_mode = #tpu.pipeline_mode<synchronous>, transform_indices = @transform_4, window_bounds = array<i64: 1, 128>}, {pipeline_mode = #tpu.pipeline_mode<synchronous>, transform_indices = @transform_5, window_bounds = array<i64: 1, 128>}, {pipeline_mode = #tpu.pipeline_mode<synchronous>, transform_indices = @transform_6, window_bounds = array<i64: 1, 128>}, {transform_indices = @transform_7, window_bounds = array<i64: 8, 128>}]} {
    %c0 = arith.constant 0 : index
    %c0_0 = arith.constant 0 : index
    %0 = vector.load %arg1[%c0, %c0_0] : memref<8x128xf32, #tpu.memory_space<vmem>>, vector<8x128xf32>
    %c0_1 = arith.constant 0 : index
    %c0_2 = arith.constant 0 : index
    %1 = vector.load %arg2[%c0_1, %c0_2] : memref<128x128xf32, #tpu.memory_space<vmem>>, vector<128x128xf32>
    %cst = arith.constant dense<0.000000e+00> : vector<8x128xf32>
    %2 = tpu.matmul %0, %1, %cst {dimension_numbers = #tpu.dot_dimension_numbers<[1], [0], [0], [1], [0, 0, 1, 1], [], []>} : vector<8x128xf32>, vector<128x128xf32>, vector<8x128xf32> -> vector<8x128xf32>
    %c0_3 = arith.constant 0 : index
    %c0_4 = arith.constant 0 : index
    %3 = vector.load %arg3[%c0_3, %c0_4] : memref<1x128xf32, #tpu.memory_space<vmem>>, vector<1x128xf32>
    %4 = vector.broadcast %3 : vector<1x128xf32> to vector<8x128xf32>
    %5 = arith.addf %2, %4 : vector<8x128xf32>
    %cst_5 = arith.constant 5.000000e-01 : f32
    %6 = vector.broadcast %cst_5 : f32 to vector<8x128xf32>
    %7 = arith.mulf %6, %5 : vector<8x128xf32>
    %cst_6 = arith.constant 0.707106769 : f32
    %8 = vector.broadcast %cst_6 : f32 to vector<8x128xf32>
    %9 = arith.mulf %5, %8 : vector<8x128xf32>
    %10 = math.erf %9 : vector<8x128xf32>
    %cst_7 = arith.constant 1.000000e+00 : f32
    %11 = vector.broadcast %cst_7 : f32 to vector<8x128xf32>
    %12 = arith.addf %11, %10 : vector<8x128xf32>
    %13 = arith.mulf %7, %12 : vector<8x128xf32>
    %c0_8 = arith.constant 0 : index
    %c0_9 = arith.constant 0 : index
    %14 = vector.load %arg4[%c0_8, %c0_9] : memref<128x128xf32, #tpu.memory_space<vmem>>, vector<128x128xf32>
    %cst_10 = arith.constant dense<0.000000e+00> : vector<8x128xf32>
    %15 = tpu.matmul %13, %14, %cst_10 {dimension_numbers = #tpu.dot_dimension_numbers<[1], [0], [0], [1], [0, 0, 1, 1], [], []>} : vector<8x128xf32>, vector<128x128xf32>, vector<8x128xf32> -> vector<8x128xf32>
    %c0_11 = arith.constant 0 : index
    %c0_12 = arith.constant 0 : index
    %16 = vector.load %arg5[%c0_11, %c0_12] : memref<1x128xf32, #tpu.memory_space<vmem>>, vector<1x128xf32>
    %17 = vector.broadcast %16 : vector<1x128xf32> to vector<8x128xf32>
    %18 = arith.addf %15, %17 : vector<8x128xf32>
    %19 = arith.addf %18, %0 : vector<8x128xf32>
    %c0_13 = arith.constant 0 : index
    %c0_14 = arith.constant 0 : index
    %20 = vector.load %arg6[%c0_13, %c0_14] : memref<1x128xf32, #tpu.memory_space<vmem>>, vector<1x128xf32>
    %c0_15 = arith.constant 0 : index
    %c0_16 = arith.constant 0 : index
    %21 = vector.load %arg7[%c0_15, %c0_16] : memref<1x128xf32, #tpu.memory_space<vmem>>, vector<1x128xf32>
    %cst_17 = arith.constant dense<0.000000e+00> : vector<8xf32>
    %22 = vector.multi_reduction <add>, %19, %cst_17 [1] : vector<8x128xf32> to vector<8xf32>
    %23 = vector.shape_cast %22 : vector<8xf32> to vector<8x1xf32>
    %cst_18 = arith.constant 3.125000e-02 : f32
    %24 = vector.broadcast %cst_18 : f32 to vector<8x1xf32>
    %25 = arith.mulf %23, %24 : vector<8x1xf32>
    %26 = arith.mulf %19, %19 : vector<8x128xf32>
    %cst_19 = arith.constant dense<0.000000e+00> : vector<8xf32>
    %27 = vector.multi_reduction <add>, %26, %cst_19 [1] : vector<8x128xf32> to vector<8xf32>
    %28 = vector.shape_cast %27 : vector<8xf32> to vector<8x1xf32>
    %cst_20 = arith.constant 3.125000e-02 : f32
    %29 = vector.broadcast %cst_20 : f32 to vector<8x1xf32>
    %30 = arith.mulf %28, %29 : vector<8x1xf32>
    %31 = arith.mulf %25, %25 : vector<8x1xf32>
    %32 = arith.subf %30, %31 : vector<8x1xf32>
    %cst_21 = arith.constant 0.000000e+00 : f32
    %33 = vector.broadcast %cst_21 : f32 to vector<8x1xf32>
    %34 = arith.maximumf %32, %33 : vector<8x1xf32>
    %35 = vector.broadcast %25 : vector<8x1xf32> to vector<8x128xf32>
    %36 = arith.subf %19, %35 : vector<8x128xf32>
    %cst_22 = arith.constant 9.99999997E-7 : f32
    %37 = vector.broadcast %cst_22 : f32 to vector<8x1xf32>
    %38 = arith.addf %34, %37 : vector<8x1xf32>
    %39 = math.rsqrt %38 : vector<8x1xf32>
    %40 = vector.broadcast %39 : vector<8x1xf32> to vector<8x128xf32>
    %41 = arith.mulf %36, %40 : vector<8x128xf32>
    %42 = vector.broadcast %20 : vector<1x128xf32> to vector<8x128xf32>
    %43 = arith.mulf %41, %42 : vector<8x128xf32>
    %44 = vector.broadcast %21 : vector<1x128xf32> to vector<8x128xf32>
    %45 = arith.addf %43, %44 : vector<8x128xf32>
    %c0_23 = arith.constant 0 : index
    %c0_24 = arith.constant 0 : index
    %46 = vector.load %arg8[%c0_23, %c0_24] : memref<8x128xf32, #tpu.memory_space<vmem>>, vector<8x128xf32>
    tpu.vector_store %arg8[%c0_23, %c0_24], %45 {strides = array<i32>} : memref<8x128xf32, #tpu.memory_space<vmem>>, vector<8x128xf32>,
    return
  }
  func.func @transform_0(%arg0: i32) -> (i32, i32) {
    %c0_i32 = arith.constant 0 : i32
    %c0_i32_0 = arith.constant 0 : i32
    return %arg0, %c0_i32 : i32, i32
  }
  func.func @transform_1(%arg0: i32) -> (i32, i32) {
    %c0_i32 = arith.constant 0 : i32
    %c0_i32_0 = arith.constant 0 : i32
    %c0_i32_1 = arith.constant 0 : i32
    return %c0_i32, %c0_i32_0 : i32, i32
  }
  func.func @transform_2(%arg0: i32) -> (i32, i32) {
    %c0_i32 = arith.constant 0 : i32
    %c0_i32_0 = arith.constant 0 : i32
    %c0_i32_1 = arith.constant 0 : i32
    return %c0_i32, %c0_i32_0 : i32, i32
  }
  func.func @transform_3(%arg0: i32) -> (i32, i32) {
    %c0_i32 = arith.constant 0 : i32
    %c0_i32_0 = arith.constant 0 : i32
    %c0_i32_1 = arith.constant 0 : i32
    return %c0_i32, %c0_i32_0 : i32, i32
  }
  func.func @transform_4(%arg0: i32) -> (i32, i32) {
    %c0_i32 = arith.constant 0 : i32
    %c0_i32_0 = arith.constant 0 : i32
    %c0_i32_1 = arith.constant 0 : i32
    return %c0_i32, %c0_i32_0 : i32, i32
  }
  func.func @transform_5(%arg0: i32) -> (i32, i32) {
    %c0_i32 = arith.constant 0 : i32
    %c0_i32_0 = arith.constant 0 : i32
    %c0_i32_1 = arith.constant 0 : i32
    return %c0_i32, %c0_i32_0 : i32, i32
  }
  func.func @transform_6(%arg0: i32) -> (i32, i32) {
    %c0_i32 = arith.constant 0 : i32
    %c0_i32_0 = arith.constant 0 : i32
    %c0_i32_1 = arith.constant 0 : i32
    return %c0_i32, %c0_i32_0 : i32, i32
  }
  func.func @transform_7(%arg0: i32) -> (i32, i32) {
    %c0_i32 = arith.constant 0 : i32
    %c0_i32_0 = arith.constant 0 : i32
    return %arg0, %c0_i32 : i32, i32
  }
}

module attributes {stable_mosaic.version = 11 : i64} {
  func.func @_ffn_kernel(%arg0: i32, %arg1: memref<8x128xf32, #tpu.memory_space<vmem>>, %arg2: memref<128x128xf32, #tpu.memory_space<vmem>>, %arg3: memref<1x128xf32, #tpu.memory_space<vmem>>, %arg4: memref<128x128xf32, #tpu.memory_space<vmem>>, %arg5: memref<1x128xf32, #tpu.memory_space<vmem>>, %arg6: memref<1x128xf32, #tpu.memory_space<vmem>>, %arg7: memref<1x128xf32, #tpu.memory_space<vmem>>, %arg8: memref<8x128xf32, #tpu.memory_space<vmem>>) attributes {dimension_semantics = [#tpu.dimension_semantics<parallel>], iteration_bounds = array<i64: 2>, scalar_prefetch = 0 : i64, scratch_operands = 0 : i64, tpu.core_type = #tpu.core_type<tc>, window_params = [{transform_indices = @transform_0, window_bounds = array<i64: 8, 128>}, {pipeline_mode = #tpu.pipeline_mode<synchronous>, transform_indices = @transform_1, window_bounds = array<i64: 128, 128>}, {pipeline_mode = #tpu.pipeline_mode<synchronous>, transform_indices = @transform_2, window_bounds = array<i64: 1, 128>}, {pipeline_mode = #tpu.pipeline_mode<synchronous>, transform_indices = @transform_3, window_bounds = array<i64: 128, 128>}, {pipeline_mode = #tpu.pipeline_mode<synchronous>, transform_indices = @transform_4, window_bounds = array<i64: 1, 128>}, {pipeline_mode = #tpu.pipeline_mode<synchronous>, transform_indices = @transform_5, window_bounds = array<i64: 1, 128>}, {pipeline_mode = #tpu.pipeline_mode<synchronous>, transform_indices = @transform_6, window_bounds = array<i64: 1, 128>}, {transform_indices = @transform_7, window_bounds = array<i64: 8, 128>}]} {
    %c0 = arith.constant 0 : index
    %c0_0 = arith.constant 0 : index
    %0 = vector.load %arg1[%c0, %c0_0] : memref<8x128xf32, #tpu.memory_space<vmem>>, vector<8x128xf32>
    %c0_1 = arith.constant 0 : index
    %c0_2 = arith.constant 0 : index
    %1 = vector.load %arg2[%c0_1, %c0_2] : memref<128x128xf32, #tpu.memory_space<vmem>>, vector<128x128xf32>
    %cst = arith.constant dense<0.000000e+00> : vector<8x128xf32>
    %2 = tpu.matmul %0, %1, %cst {dimension_numbers = #tpu.dot_dimension_numbers<[1], [0], [0], [1], [0, 0, 1, 1], [], []>} : vector<8x128xf32>, vector<128x128xf32>, vector<8x128xf32> -> vector<8x128xf32>
    %c0_3 = arith.constant 0 : index
    %c0_4 = arith.constant 0 : index
    %3 = vector.load %arg3[%c0_3, %c0_4] : memref<1x128xf32, #tpu.memory_space<vmem>>, vector<1x128xf32>
    %4 = vector.broadcast %3 : vector<1x128xf32> to vector<8x128xf32>
    %5 = arith.addf %2, %4 : vector<8x128xf32>
    %cst_5 = arith.constant 5.000000e-01 : f32
    %6 = vector.broadcast %cst_5 : f32 to vector<8x128xf32>
    %7 = arith.mulf %6, %5 : vector<8x128xf32>
    %cst_6 = arith.constant 0.707106769 : f32
    %8 = vector.broadcast %cst_6 : f32 to vector<8x128xf32>
    %9 = arith.mulf %5, %8 : vector<8x128xf32>
    %10 = math.erf %9 : vector<8x128xf32>
    %cst_7 = arith.constant 1.000000e+00 : f32
    %11 = vector.broadcast %cst_7 : f32 to vector<8x128xf32>
    %12 = arith.addf %11, %10 : vector<8x128xf32>
    %13 = arith.mulf %7, %12 : vector<8x128xf32>
    %c0_8 = arith.constant 0 : index
    %c0_9 = arith.constant 0 : index
    %14 = vector.load %arg4[%c0_8, %c0_9] : memref<128x128xf32, #tpu.memory_space<vmem>>, vector<128x128xf32>
    %cst_10 = arith.constant dense<0.000000e+00> : vector<8x128xf32>
    %15 = tpu.matmul %13, %14, %cst_10 {dimension_numbers = #tpu.dot_dimension_numbers<[1], [0], [0], [1], [0, 0, 1, 1], [], []>} : vector<8x128xf32>, vector<128x128xf32>, vector<8x128xf32> -> vector<8x128xf32>
    %c0_11 = arith.constant 0 : index
    %c0_12 = arith.constant 0 : index
    %16 = vector.load %arg5[%c0_11, %c0_12] : memref<1x128xf32, #tpu.memory_space<vmem>>, vector<1x128xf32>
    %17 = vector.broadcast %16 : vector<1x128xf32> to vector<8x128xf32>
    %18 = arith.addf %15, %17 : vector<8x128xf32>
    %19 = arith.addf %18, %0 : vector<8x128xf32>
    %c0_13 = arith.constant 0 : index
    %c0_14 = arith.constant 0 : index
    %20 = vector.load %arg6[%c0_13, %c0_14] : memref<1x128xf32, #tpu.memory_space<vmem>>, vector<1x128xf32>
    %c0_15 = arith.constant 0 : index
    %c0_16 = arith.constant 0 : index
    %21 = vector.load %arg7[%c0_15, %c0_16] : memref<1x128xf32, #tpu.memory_space<vmem>>, vector<1x128xf32>
    %cst_17 = arith.constant dense<0.000000e+00> : vector<8xf32>
    %22 = vector.multi_reduction <add>, %19, %cst_17 [1] : vector<8x128xf32> to vector<8xf32>
    %23 = vector.shape_cast %22 : vector<8xf32> to vector<8x1xf32>
    %cst_18 = arith.constant 3.125000e-02 : f32
    %24 = vector.broadcast %cst_18 : f32 to vector<8x1xf32>
    %25 = arith.mulf %23, %24 : vector<8x1xf32>
    %26 = arith.mulf %19, %19 : vector<8x128xf32>
    %cst_19 = arith.constant dense<0.000000e+00> : vector<8xf32>
    %27 = vector.multi_reduction <add>, %26, %cst_19 [1] : vector<8x128xf32> to vector<8xf32>
    %28 = vector.shape_cast %27 : vector<8xf32> to vector<8x1xf32>
    %cst_20 = arith.constant 3.125000e-02 : f32
    %29 = vector.broadcast %cst_20 : f32 to vector<8x1xf32>
    %30 = arith.mulf %28, %29 : vector<8x1xf32>
    %31 = arith.mulf %25, %25 : vector<8x1xf32>
    %32 = arith.subf %30, %31 : vector<8x1xf32>
    %cst_21 = arith.constant 0.000000e+00 : f32
    %33 = vector.broadcast %cst_21 : f32 to vector<8x1xf32>
    %34 = arith.maximumf %32, %33 : vector<8x1xf32>
    %35 = vector.broadcast %25 : vector<8x1xf32> to vector<8x128xf32>
    %36 = arith.subf %19, %35 : vector<8x128xf32>
    %cst_22 = arith.constant 9.99999997E-7 : f32
    %37 = vector.broadcast %cst_22 : f32 to vector<8x1xf32>
    %38 = arith.addf %34, %37 : vector<8x1xf32>
    %39 = math.rsqrt %38 : vector<8x1xf32>
    %40 = vector.broadcast %39 : vector<8x1xf32> to vector<8x128xf32>
    %41 = arith.mulf %36, %40 : vector<8x128xf32>
    %42 = vector.broadcast %20 : vector<1x128xf32> to vector<8x128xf32>
    %43 = arith.mulf %41, %42 : vector<8x128xf32>
    %44 = vector.broadcast %21 : vector<1x128xf32> to vector<8x128xf32>
    %45 = arith.addf %43, %44 : vector<8x128xf32>
    %c0_23 = arith.constant 0 : index
    %c0_24 = arith.constant 0 : index
    %46 = vector.load %arg8[%c0_23, %c0_24] : memref<8x128xf32, #tpu.memory_space<vmem>>, vector<8x128xf32>
    tpu.vector_store %arg8[%c0_23, %c0_24], %45 {strides = array<i32>} : memref<8x128xf32, #tpu.memory_space<vmem>>, vector<8x128xf32>,
    return
  }
  func.func @transform_0(%arg0: i32) -> (i32, i32) {
    %c0_i32 = arith.constant 0 : i32
    %c0_i32_0 = arith.constant 0 : i32
    return %arg0, %c0_i32 : i32, i32
  }
  func.func @transform_1(%arg0: i32) -> (i32, i32) {
    %c0_i32 = arith.constant 0 : i32
    %c0_i32_0 = arith.constant 0 : i32
    %c0_i32_1 = arith.constant 0 : i32
    return %c0_i32, %c0_i32_0 : i32, i32
  }
  func.func @transform_2(%arg0: i32) -> (i32, i32) {
    %c0_i32 = arith.constant 0 : i32
    %c0_i32_0 = arith.constant 0 : i32
    %c0_i32_1 = arith.constant 0 : i32
    return %c0_i32, %c0_i32_0 : i32, i32
  }
  func.func @transform_3(%arg0: i32) -> (i32, i32) {
    %c0_i32 = arith.constant 0 : i32
    %c0_i32_0 = arith.constant 0 : i32
    %c0_i32_1 = arith.constant 0 : i32
    return %c0_i32, %c0_i32_0 : i32, i32
  }
  func.func @transform_4(%arg0: i32) -> (i32, i32) {
    %c0_i32 = arith.constant 0 : i32
    %c0_i32_0 = arith.constant 0 : i32
    %c0_i32_1 = arith.constant 0 : i32
    return %c0_i32, %c0_i32_0 : i32, i32
  }
  func.func @transform_5(%arg0: i32) -> (i32, i32) {
    %c0_i32 = arith.constant 0 : i32
    %c0_i32_0 = arith.constant 0 : i32
    %c0_i32_1 = arith.constant 0 : i32
    return %c0_i32, %c0_i32_0 : i32, i32
  }
  func.func @transform_6(%arg0: i32) -> (i32, i32) {
    %c0_i32 = arith.constant 0 : i32
    %c0_i32_0 = arith.constant 0 : i32
    %c0_i32_1 = arith.constant 0 : i32
    return %c0_i32, %c0_i32_0 : i32, i32
  }
  func.func @transform_7(%arg0: i32) -> (i32, i32) {
    %c0_i32 = arith.constant 0 : i32
    %c0_i32_0 = arith.constant 0 : i32
    return %arg0, %c0_i32 : i32, i32
  }
}

</mosaic_0001>

<llo_original>
// kernel: tpu_custom_call.1
$region0: #{tpu_custom_call.1}
  #allocation0 [shape = 'u32[]', space=smem, size = 0x4, offset = 0x4, fixed_abs, tag = 'smem constant byte address 0x4 - core index']
  #allocation1 [shape = 'u32[144,128]{1,0:T(1,128)}', space=vmem, size = 0x12000, scoped, tag = 'internal scratch']
  %s0 = inlined_call_operand.hbm [shape: f32[16,128], index: 0, kind: input, shape index: {}]
  %s1 = inlined_call_operand.hbm [shape: f32[128,128], index: 1, kind: input, shape index: {}]
  %s2 = inlined_call_operand.vmem [shape: f32[1,128], index: 2, kind: input, shape index: {}]
  %s3 = inlined_call_operand.hbm [shape: f32[128,128], index: 3, kind: input, shape index: {}]
  %s4 = inlined_call_operand.vmem [shape: f32[1,128], index: 4, kind: input, shape index: {}]
  %s5 = inlined_call_operand.vmem [shape: f32[1,128], index: 5, kind: input, shape index: {}]
  %s6 = inlined_call_operand.vmem [shape: f32[1,128], index: 6, kind: input, shape index: {}]
  %s7 = inlined_call_operand.hbm [shape: f32[16,128], index: 7, kind: output, shape index: {}]
  %s8 = sld [smem:[#allocation0]]
  $region73: #{tpu_custom_call.1} parent=0
    _
  %s10 = ssub.s32 1, %s8
  %s11 = scalar_select 0, %s10, %s8
  $region1: #{tpu_custom_call.1} parent=0
    #allocation2 [shape = 'u8[8192]{0}', space=vmem, size = 0x2000, scoped, tag = 'input window, operand 0']
    #allocation3 [shape = 's32[2]{0}', space=sflag, size = 0x8, scoped, tag = 'scoped memory for tpu_custom_call.1']
    #allocation4 [shape = 's32[2]{0}', space=sflag, size = 0x8, scoped, tag = 'scoped memory for tpu_custom_call.1']
    #allocation5 [shape = 'u8[65536]{0}', space=vmem, size = 0x10000, scoped, tag = 'input window, operand 1, single buffered']
    #allocation6 [shape = 's32[1]{0}', space=sflag, size = 0x4, scoped, tag = 'scoped memory for tpu_custom_call.1']
    #allocation7 [shape = 'u8[65536]{0}', space=vmem, size = 0x10000, scoped, tag = 'input window, operand 3, single buffered']
    #allocation8 [shape = 'u8[8192]{0}', space=vmem, size = 0x2000, scoped, tag = 'output window, operand 0']
    %12 = vsyncpa [#allocation3], 0
    %s13 = scalar_lea.sflag [#allocation3], 1
    %14 = vsyncpa %s13, 0
    %15 = vsyncpa [#allocation6], 0
    %16 = vsyncpa [#allocation4], 0
    %s17 = scalar_lea.sflag [#allocation4], 1
    %18 = vsyncpa %s17, 0
    loop: start=0, step=1, limit=4
    $region2: #{tpu_custom_call.1} parent=1 // loop_pre_header
      _
    $region3: #{tpu_custom_call.1} parent=1 // loop_header
      %s20 = sphi 0, %s24
      %p21 = scmp.ge.s32.totalorder %s20, 4
      %s30 = sphi 0, %s32
      %s33 = sphi 0, %s30
      %s34 = sphi 0, %s33
      %s50 = sphi 0, %s34
      %s54 = sphi 0, %s54
      %s56 = sphi 0, %s54
      %s57 = sphi 0, %s56
      %s71 = sphi 0, %s57
      %s75 = sphi 0, %s75
      %s77 = sphi 0, %s75
      %s78 = sphi 0, %s77
      %s92 = sphi 0, %s78
      %s96 = sphi 0, %s96
      %s98 = sphi 0, %s96
      %s99 = sphi 0, %s98
      %s113 = sphi 0, %s99
      %s117 = sphi 0, %s117
      %s119 = sphi 0, %s117
      %s120 = sphi 0, %s119
      %s134 = sphi 0, %s120
      %s138 = sphi 0, %s138
      %s140 = sphi 0, %s138
      %s141 = sphi 0, %s140
      %s155 = sphi 0, %s141
      %s159 = sphi 0, %s159
      %s161 = sphi 0, %s159
      %s162 = sphi 0, %s161
      %s176 = sphi 0, %s162
      %s182 = sphi 0, %s184
      %s185 = sphi 0, %s182
      %s186 = sphi 0, %s185
      %s202 = sphi 0, %s186
    $region4: #{tpu_custom_call.1} parent=1 // loop_header_branch
      %23 = sbr.rel (%p21) target = $region8
    $region5: #{tpu_custom_call.1} parent=1 // loop_body
      %s25 = ssub.s32 %s20, 1
      %s26 = ssub.s32 %s20, 2
      %s27 = sadd.s32 %s20, 1
      %s28 = ssub.s32 %s20, %s27
      %p29 = scmp.eq.s32.totalorder %s28, 0
      %s31 = sadd.s32 %s30, 1
      %s32 = scalar_select %p29, %s30, %s31
      %p35 = pneg %p29
      %p36 = scmp.eq.s32.totalorder %s20, 1
      %p37 = por %p35, %p36
      %p38 = scmp.ne.s32.totalorder %s30, %s33
      %p39 = scmp.eq.s32.totalorder %s20, 0
      %p40 = por %p38, %p39
      %p41 = scmp.ne.s32.totalorder %s30, %s33
      %p42 = scmp.eq.s32.totalorder %s25, 1
      %p43 = por %p41, %p42
      %p44 = scmp.ne.s32.totalorder %s33, %s34
      %p45 = scmp.eq.s32.totalorder %s25, 0
      %p46 = por %p44, %p45
      %p47 = scmp.ne.s32.totalorder %s33, %s34
      %p48 = scmp.eq.s32.totalorder %s26, 1
      %p49 = por %p47, %p48
      %p51 = scmp.ne.s32.totalorder %s34, %s50
      %p52 = scmp.eq.s32.totalorder %s26, 0
      %p53 = por %p51, %p52
      %s55 = sadd.s32 %s54, 1
      %p58 = scmp.eq.s32.totalorder %s20, 1
      %p59 = scmp.ne.s32.totalorder %s54, %s56
      %p60 = scmp.eq.s32.totalorder %s20, 0
      %p61 = por %p59, %p60
      %p62 = scmp.ne.s32.totalorder %s54, %s56
      %p63 = scmp.eq.s32.totalorder %s25, 1
      %p64 = por %p62, %p63
      %p65 = scmp.ne.s32.totalorder %s56, %s57
      %p66 = scmp.eq.s32.totalorder %s25, 0
      %p67 = por %p65, %p66
      %p68 = scmp.ne.s32.totalorder %s56, %s57
      %p69 = scmp.eq.s32.totalorder %s26, 1
      %p70 = por %p68, %p69
      %p72 = scmp.ne.s32.totalorder %s57, %s71
      %p73 = scmp.eq.s32.totalorder %s26, 0
      %p74 = por %p72, %p73
      %s76 = sadd.s32 %s75, 1
      %p79 = scmp.eq.s32.totalorder %s20, 1
      %p80 = scmp.ne.s32.totalorder %s75, %s77
      %p81 = scmp.eq.s32.totalorder %s20, 0
      %p82 = por %p80, %p81
      %p83 = scmp.ne.s32.totalorder %s75, %s77
      %p84 = scmp.eq.s32.totalorder %s25, 1
      %p85 = por %p83, %p84
      %p86 = scmp.ne.s32.totalorder %s77, %s78
      %p87 = scmp.eq.s32.totalorder %s25, 0
      %p88 = por %p86, %p87
      %p89 = scmp.ne.s32.totalorder %s77, %s78
      %p90 = scmp.eq.s32.totalorder %s26, 1
      %p91 = por %p89, %p90
      %p93 = scmp.ne.s32.totalorder %s78, %s92
      %p94 = scmp.eq.s32.totalorder %s26, 0
      %p95 = por %p93, %p94
      %s97 = sadd.s32 %s96, 1
      %p100 = scmp.eq.s32.totalorder %s20, 1
      %p101 = scmp.ne.s32.totalorder %s96, %s98
      %p102 = scmp.eq.s32.totalorder %s20, 0
      %p103 = por %p101, %p102
      %p104 = scmp.ne.s32.totalorder %s96, %s98
      %p105 = scmp.eq.s32.totalorder %s25, 1
      %p106 = por %p104, %p105
      %p107 = scmp.ne.s32.totalorder %s98, %s99
      %p108 = scmp.eq.s32.totalorder %s25, 0
      %p109 = por %p107, %p108
      %p110 = scmp.ne.s32.totalorder %s98, %s99
      %p111 = scmp.eq.s32.totalorder %s26, 1
      %p112 = por %p110, %p111
      %p114 = scmp.ne.s32.totalorder %s99, %s113
      %p115 = scmp.eq.s32.totalorder %s26, 0
      %p116 = por %p114, %p115
      %s118 = sadd.s32 %s117, 1
      %p121 = scmp.eq.s32.totalorder %s20, 1
      %p122 = scmp.ne.s32.totalorder %s117, %s119
      %p123 = scmp.eq.s32.totalorder %s20, 0
      %p124 = por %p122, %p123
      %p125 = scmp.ne.s32.totalorder %s117, %s119
      %p126 = scmp.eq.s32.totalorder %s25, 1
      %p127 = por %p125, %p126
      %p128 = scmp.ne.s32.totalorder %s119, %s120
      %p129 = scmp.eq.s32.totalorder %s25, 0
      %p130 = por %p128, %p129
      %p131 = scmp.ne.s32.totalorder %s119, %s120
      %p132 = scmp.eq.s32.totalorder %s26, 1
      %p133 = por %p131, %p132
      %p135 = scmp.ne.s32.totalorder %s120, %s134
      %p136 = scmp.eq.s32.totalorder %s26, 0
      %p137 = por %p135, %p136
      %s139 = sadd.s32 %s138, 1
      %p142 = scmp.eq.s32.totalorder %s20, 1
      %p143 = scmp.ne.s32.totalorder %s138, %s140
      %p144 = scmp.eq.s32.totalorder %s20, 0
      %p145 = por %p143, %p144
      %p146 = scmp.ne.s32.totalorder %s138, %s140
      %p147 = scmp.eq.s32.totalorder %s25, 1
      %p148 = por %p146, %p147
      %p149 = scmp.ne.s32.totalorder %s140, %s141
      %p150 = scmp.eq.s32.totalorder %s25, 0
      %p151 = por %p149, %p150
      %p152 = scmp.ne.s32.totalorder %s140, %s141
      %p153 = scmp.eq.s32.totalorder %s26, 1
      %p154 = por %p152, %p153
      %p156 = scmp.ne.s32.totalorder %s141, %s155
      %p157 = scmp.eq.s32.totalorder %s26, 0
      %p158 = por %p156, %p157
      %s160 = sadd.s32 %s159, 1
      %p163 = scmp.eq.s32.totalorder %s20, 1
      %p164 = scmp.ne.s32.totalorder %s159, %s161
      %p165 = scmp.eq.s32.totalorder %s20, 0
      %p166 = por %p164, %p165
      %p167 = scmp.ne.s32.totalorder %s159, %s161
      %p168 = scmp.eq.s32.totalorder %s25, 1
      %p169 = por %p167, %p168
      %p170 = scmp.ne.s32.totalorder %s161, %s162
      %p171 = scmp.eq.s32.totalorder %s25, 0
      %p172 = por %p170, %p171
      %p173 = scmp.ne.s32.totalorder %s161, %s162
      %p174 = scmp.eq.s32.totalorder %s26, 1
      %p175 = por %p173, %p174
      %p177 = scmp.ne.s32.totalorder %s162, %s176
      %p178 = scmp.eq.s32.totalorder %s26, 0
      %p179 = por %p177, %p178
      %s180 = ssub.s32 %s20, %s27
      %p181 = scmp.eq.s32.totalorder %s180, 0
      %s183 = sadd.s32 %s182, 1
      %s184 = scalar_select %p181, %s182, %s183
      %p187 = pneg %p181
      %p188 = scmp.eq.s32.totalorder %s20, 1
      %p189 = por %p187, %p188
      %p190 = scmp.ne.s32.totalorder %s182, %s185
      %p191 = scmp.eq.s32.totalorder %s20, 0
      %p192 = por %p190, %p191
      %p193 = scmp.ne.s32.totalorder %s182, %s185
      %p194 = scmp.eq.s32.totalorder %s25, 1
      %p195 = por %p193, %p194
      %p196 = scmp.ne.s32.totalorder %s185, %s186
      %p197 = scmp.eq.s32.totalorder %s25, 0
      %p198 = por %p196, %p197
      %p199 = scmp.ne.s32.totalorder %s185, %s186
      %p200 = scmp.eq.s32.totalorder %s26, 1
      %p201 = por %p199, %p200
      %p203 = scmp.ne.s32.totalorder %s186, %s202
      %p204 = scmp.eq.s32.totalorder %s26, 0
      %p205 = por %p203, %p204
      %p206 = scmp.le.s32.totalorder 1, %s20
      %p207 = scmp.lt.s32.totalorder %s20, 3
      %p208 = pnand %p206, %p207
      %p209 = pneg %p208
      // Predicated region
      $region9: #{tpu_custom_call.1} parent=5 // pred_check
        _
      $region10: #{tpu_custom_call.1} parent=5 // pred_check_branch
        %211 = sbr.rel (%p208) target = $region12
      $region11: #{tpu_custom_call.1} parent=5 // pred_region
        %s212 = ssub.s32 %s20, 1
        // Predicated region
        $region13: #{tpu_custom_call.1} parent=11 // pred_check
          %p213 = pneg %p67
        $region14: #{tpu_custom_call.1} parent=11 // pred_check_branch
          %215 = sbr.rel (%p213) target = $region16
        $region15: #{tpu_custom_call.1} parent=11 // pred_region
          %s217 = ssub.s32 2048, 2048
          %218 = vsyncadd [#allocation6], %s217
          %s219 = sshll.u32 [#allocation5], 4
          %s220 = int_to_ptr.vmem [resolvable:$true] %s219
          %225 = dma.hbm_to_vmem [thread:$0]  %s1, 2048, %s220, [#allocation6], 128, 128, 8
        $region16: #{tpu_custom_call.1} parent=11 // pred_fallthru
          _
        // Predicated region
        $region17: #{tpu_custom_call.1} parent=11 // pred_check
          %p226 = pneg %p88
        $region18: #{tpu_custom_call.1} parent=11 // pred_check_branch
          %228 = sbr.rel (%p226) target = $region20
        $region19: #{tpu_custom_call.1} parent=11 // pred_region
          _
        $region20: #{tpu_custom_call.1} parent=11 // pred_fallthru
          _
        // Predicated region
        $region21: #{tpu_custom_call.1} parent=11 // pred_check
          %p229 = pneg %p109
        $region22: #{tpu_custom_call.1} parent=11 // pred_check_branch
          %231 = sbr.rel (%p229) target = $region24
        $region23: #{tpu_custom_call.1} parent=11 // pred_region
          %s233 = ssub.s32 2048, 2048
          %234 = vsyncadd [#allocation6], %s233
          %s235 = sshll.u32 [#allocation7], 4
          %s236 = int_to_ptr.vmem [resolvable:$true] %s235
          %241 = dma.hbm_to_vmem [thread:$0]  %s3, 2048, %s236, [#allocation6], 128, 128, 8
        $region24: #{tpu_custom_call.1} parent=11 // pred_fallthru
          _
        // Predicated region
        $region25: #{tpu_custom_call.1} parent=11 // pred_check
          %p242 = pneg %p130
        $region26: #{tpu_custom_call.1} parent=11 // pred_check_branch
          %244 = sbr.rel (%p242) target = $region28
        $region27: #{tpu_custom_call.1} parent=11 // pred_region
          _
        $region28: #{tpu_custom_call.1} parent=11 // pred_fallthru
          _
        // Predicated region
        $region29: #{tpu_custom_call.1} parent=11 // pred_check
          %p245 = pneg %p151
        $region30: #{tpu_custom_call.1} parent=11 // pred_check_branch
          %247 = sbr.rel (%p245) target = $region32
        $region31: #{tpu_custom_call.1} parent=11 // pred_region
          _
        $region32: #{tpu_custom_call.1} parent=11 // pred_fallthru
          _
        // Predicated region
        $region33: #{tpu_custom_call.1} parent=11 // pred_check
          %p248 = pneg %p172
        $region34: #{tpu_custom_call.1} parent=11 // pred_check_branch
          %250 = sbr.rel (%p248) target = $region36
        $region35: #{tpu_custom_call.1} parent=11 // pred_region
          _
        $region36: #{tpu_custom_call.1} parent=11 // pred_fallthru
          _
      $region12: #{tpu_custom_call.1} parent=5 // pred_fallthru
        _
      %p251 = scmp.lt.s32.totalorder %s20, 2
      // Predicated region
      $region37: #{tpu_custom_call.1} parent=5 // pred_check
        %p252 = pneg %p251
      $region38: #{tpu_custom_call.1} parent=5 // pred_check_branch
        %254 = sbr.rel (%p252) target = $region40
      $region39: #{tpu_custom_call.1} parent=5 // pred_region
        // Predicated region
        $region41: #{tpu_custom_call.1} parent=39 // pred_check
          %p255 = pneg %p40
        $region42: #{tpu_custom_call.1} parent=39 // pred_check_branch
          %257 = sbr.rel (%p255) target = $region44
        $region43: #{tpu_custom_call.1} parent=39 // pred_region
          %s258 = sand.u32 %s30, 1
          %s259 = scalar_lea.sflag [#allocation3], %s258
          %s260 = sand.u32 %s30, 1
          %s261 = smul.addr %s260, 8
          %s262 = scalar_lea.vmem [#allocation2], %s261
          %s264 = ssub.s32 128, 128
          %265 = vsyncadd %s259, %s264
          %s266 = smul.addr %s20, 128
          %s267 = scalar_lea.hbm %s0, %s266
          %s269 = sshll.u32 %s262, 4
          %s270 = int_to_ptr.vmem [resolvable:$true] %s269
          %272 = dma.hbm_to_vmem [thread:$0]  %s267, 128, %s270, %s259
        $region44: #{tpu_custom_call.1} parent=39 // pred_fallthru
          _
      $region40: #{tpu_custom_call.1} parent=5 // pred_fallthru
        _
      %p273 = scmp.le.s32.totalorder 1, %s20
      %p274 = scmp.lt.s32.totalorder %s20, 3
      %p275 = pnand %p273, %p274
      %p276 = pneg %p275
      // Predicated region
      $region45: #{tpu_custom_call.1} parent=5 // pred_check
        _
      $region46: #{tpu_custom_call.1} parent=5 // pred_check_branch
        %278 = sbr.rel (%p275) target = $region48
      $region47: #{tpu_custom_call.1} parent=5 // pred_region
        %s279 = ssub.s32 %s20, 1
        %s280 = sand.u32 %s33, 1
        %s281 = scalar_lea.sflag [#allocation3], %s280
        %s282 = sand.u32 %s33, 1
        %s283 = smul.addr %s282, 8
        %s284 = scalar_lea.vmem [#allocation2], %s283
        // Predicated region
        $region49: #{tpu_custom_call.1} parent=47 // pred_check
          %p285 = pneg %p46
        $region50: #{tpu_custom_call.1} parent=47 // pred_check_branch
          %287 = sbr.rel (%p285) target = $region52
        $region51: #{tpu_custom_call.1} parent=47 // pred_region
          %288 = dma.done %s281, 128
        $region52: #{tpu_custom_call.1} parent=47 // pred_fallthru
          _
        // Predicated region
        $region53: #{tpu_custom_call.1} parent=47 // pred_check
          %p289 = pneg %p67
        $region54: #{tpu_custom_call.1} parent=47 // pred_check_branch
          %291 = sbr.rel (%p289) target = $region56
        $region55: #{tpu_custom_call.1} parent=47 // pred_region
          %292 = dma.done [#allocation6], 2048
        $region56: #{tpu_custom_call.1} parent=47 // pred_fallthru
          _
        // Predicated region
        $region57: #{tpu_custom_call.1} parent=47 // pred_check
          %p293 = pneg %p109
        $region58: #{tpu_custom_call.1} parent=47 // pred_check_branch
          %295 = sbr.rel (%p293) target = $region60
        $region59: #{tpu_custom_call.1} parent=47 // pred_region
          %296 = dma.done [#allocation6], 2048
        $region60: #{tpu_custom_call.1} parent=47 // pred_fallthru
          _
        %s297 = sand.u32 %s33, 1
        %s298 = scalar_lea.sflag [#allocation3], %s297
        %s299 = sand.u32 %s33, 1
        %s300 = smul.addr %s299, 8
        %s301 = scalar_lea.vmem [#allocation2], %s300
        %p302 = pneg %p46
        %p303 = pneg %p43
        %p304 = pneg %p67
        %p305 = pneg %p64
        %p306 = pneg %p88
        %p307 = pneg %p85
        %p308 = pneg %p109
        %p309 = pneg %p106
        %p310 = pneg %p130
        %p311 = pneg %p127
        %p312 = pneg %p151
        %p313 = pneg %p148
        %p314 = pneg %p172
        %p315 = pneg %p169
        %p316 = pneg %p198
        %p317 = pneg %p195
        %s318 = sand.u32 %s185, 1
        %s319 = scalar_lea.sflag [#allocation4], %s318
        %s320 = sand.u32 %s185, 1
        %s321 = smul.addr %s320, 8
        %s322 = scalar_lea.vmem [#allocation8], %s321
        %v323 = vld [vmem:[%s284] sm:$0xff]
        %v324 = vld [vmem:[#allocation5] sm:$0xff]
        %v325 = vld [vmem:[#allocation5 + $0x8] sm:$0xff]
        %v326 = vld [vmem:[#allocation5 + $0x10] sm:$0xff]
        %v327 = vld [vmem:[#allocation5 + $0x18] sm:$0xff]
        %v328 = vld [vmem:[#allocation5 + $0x20] sm:$0xff]
        %v329 = vld [vmem:[#allocation5 + $0x28] sm:$0xff]
        %v330 = vld [vmem:[#allocation5 + $0x30] sm:$0xff]
        %v331 = vld [vmem:[#allocation5 + $0x38] sm:$0xff]
        %v332 = vld [vmem:[#allocation5 + $0x40] sm:$0xff]
        %v333 = vld [vmem:[#allocation5 + $0x48] sm:$0xff]
        %v334 = vld [vmem:[#allocation5 + $0x50] sm:$0xff]
        %v335 = vld [vmem:[#allocation5 + $0x58] sm:$0xff]
        %v336 = vld [vmem:[#allocation5 + $0x60] sm:$0xff]
        %v337 = vld [vmem:[#allocation5 + $0x68] sm:$0xff]
        %v338 = vld [vmem:[#allocation5 + $0x70] sm:$0xff]
        %v339 = vld [vmem:[#allocation5 + $0x78] sm:$0xff]
        %v340 = vld [vmem:[%s2] sm:$0x1]
        %v342 = vlaneseq
        %v343 = vshrl.u32 %v342, 7
        %v344 = vsub.s32 0, %v343
        %v345 = vrot.slane %v340, %v344
        %347 = vmatprep.subr.mxu0 0.0
        %348 = vmatpush1.msra.mxu0 %v324
        %349 = vmatprep.subr.mxu0 0.0
        %350 = vmatpush1.msra.mxu0 %v325
        %351 = vmatprep.subr.mxu0 0.0
        %352 = vmatpush1.msra.mxu0 %v326
        %353 = vmatprep.subr.mxu0 0.0
        %354 = vmatpush1.msra.mxu0 %v327
        %355 = vmatprep.subr.mxu0 0.0
        %356 = vmatpush1.msra.mxu0 %v328
        %357 = vmatprep.subr.mxu0 0.0
        %358 = vmatpush1.msra.mxu0 %v329
        %359 = vmatprep.subr.mxu0 0.0
        %360 = vmatpush1.msra.mxu0 %v330
        %361 = vmatprep.subr.mxu0 0.0
        %362 = vmatpush1.msra.mxu0 %v331
        %363 = vmatprep.subr.mxu0 0.0
        %364 = vmatpush1.msra.mxu0 %v332
        %365 = vmatprep.subr.mxu0 0.0
        %366 = vmatpush1.msra.mxu0 %v333
        %367 = vmatprep.subr.mxu0 0.0
        %368 = vmatpush1.msra.mxu0 %v334
        %369 = vmatprep.subr.mxu0 0.0
        %370 = vmatpush1.msra.mxu0 %v335
        %371 = vmatprep.subr.mxu0 0.0
        %372 = vmatpush1.msra.mxu0 %v336
        %373 = vmatprep.subr.mxu0 0.0
        %374 = vmatpush1.msra.mxu0 %v337
        %375 = vmatprep.subr.mxu0 0.0
        %376 = vmatpush1.msra.mxu0 %v338
        %377 = vmatprep.subr.mxu0 0.0
        %378 = vmatpush1.msra.mxu0 %v339
        %379 = vmatprep.subr.mxu0 0.0
        %380 = vmatpush1.msra.mxu0 0.0
        %381 = vmatprep.subr.mxu0 0.0
        %382 = vmatpush1.msra.mxu0 0.0
        %383 = vmatprep.subr.mxu0 0.0
        %384 = vmatpush1.msra.mxu0 0.0
        %385 = vmatprep.subr.mxu0 0.0
        %386 = vmatpush1.msra.mxu0 0.0
        %387 = vmatprep.subr.mxu0 0.0
        %388 = vmatpush1.msra.mxu0 0.0
        %389 = vmatprep.subr.mxu0 0.0
        %390 = vmatpush1.msra.mxu0 0.0
        %391 = vmatprep.subr.mxu0 0.0
        %392 = vmatpush1.msra.mxu0 0.0
        %393 = vmatprep.subr.mxu0 0.0
        %394 = vmatpush1.msra.mxu0 0.0
        %395 = vmatprep.subr.mxu0 0.0
        %396 = vmatpush1.msra.mxu0 0.0
        %397 = vmatprep.subr.mxu0 0.0
        %398 = vmatpush1.msra.mxu0 0.0
        %399 = vmatprep.subr.mxu0 0.0
        %400 = vmatpush1.msra.mxu0 0.0
        %401 = vmatprep.subr.mxu0 0.0
        %402 = vmatpush1.msra.mxu0 0.0
        %403 = vmatprep.subr.mxu0 0.0
        %404 = vmatpush1.msra.mxu0 0.0
        %405 = vmatprep.subr.mxu0 0.0
        %406 = vmatpush1.msra.mxu0 0.0
        %407 = vmatprep.subr.mxu0 0.0
        %408 = vmatpush1.msra.mxu0 0.0
        %409 = vmatprep.subr.mxu0 0.0
        %410 = vmatpush1.msra.mxu0 0.0
        %411 = vmatprep.mubr.f32.mxu0 0.0
        %412 = vmatmul.mubr.f32.gmra.mrb[0].mxu0 %v323
        %v413 = vpop.f32.mrb[0].mxu0
        %v414 = vadd.f32 %v345, %v413
        %v415 = vpop.f32.mrb[0].mxu0
        %416 = vdwg.mxu0
        %v417 = vmul.f32 %v414, 0.5
        %v418 = vmul.f32 %v414, 0.70710677
        %v419 = verf.f32.pop %v418
        %v420 = vadd.f32 %v419, 1.0
        %v421 = vmul.f32 %v417, %v420
        %v422 = vld [vmem:[#allocation7] sm:$0xff]
        %v423 = vld [vmem:[#allocation7 + $0x8] sm:$0xff]
        %v424 = vld [vmem:[#allocation7 + $0x10] sm:$0xff]
        %v425 = vld [vmem:[#allocation7 + $0x18] sm:$0xff]
        %v426 = vld [vmem:[#allocation7 + $0x20] sm:$0xff]
        %v427 = vld [vmem:[#allocation7 + $0x28] sm:$0xff]
        %v428 = vld [vmem:[#allocation7 + $0x30] sm:$0xff]
        %v429 = vld [vmem:[#allocation7 + $0x38] sm:$0xff]
        %v430 = vld [vmem:[#allocation7 + $0x40] sm:$0xff]
        %v431 = vld [vmem:[#allocation7 + $0x48] sm:$0xff]
        %v432 = vld [vmem:[#allocation7 + $0x50] sm:$0xff]
        %v433 = vld [vmem:[#allocation7 + $0x58] sm:$0xff]
        %v434 = vld [vmem:[#allocation7 + $0x60] sm:$0xff]
        %v435 = vld [vmem:[#allocation7 + $0x68] sm:$0xff]
        %v436 = vld [vmem:[#allocation7 + $0x70] sm:$0xff]
        %v437 = vld [vmem:[#allocation7 + $0x78] sm:$0xff]
        %v438 = vld [vmem:[%s4] sm:$0x1]
        %v440 = vlaneseq
        %v441 = vshrl.u32 %v440, 7
        %v442 = vsub.s32 0, %v441
        %v443 = vrot.slane %v438, %v442
        %445 = vmatprep.subr.mxu0 0.0
        %446 = vmatpush1.msra.mxu0 %v422
        %447 = vmatprep.subr.mxu0 0.0
        %448 = vmatpush1.msra.mxu0 %v423
        %449 = vmatprep.subr.mxu0 0.0
        %450 = vmatpush1.msra.mxu0 %v424
        %451 = vmatprep.subr.mxu0 0.0
        %452 = vmatpush1.msra.mxu0 %v425
        %453 = vmatprep.subr.mxu0 0.0
        %454 = vmatpush1.msra.mxu0 %v426
        %455 = vmatprep.subr.mxu0 0.0
        %456 = vmatpush1.msra.mxu0 %v427
        %457 = vmatprep.subr.mxu0 0.0
        %458 = vmatpush1.msra.mxu0 %v428
        %459 = vmatprep.subr.mxu0 0.0
        %460 = vmatpush1.msra.mxu0 %v429
        %461 = vmatprep.subr.mxu0 0.0
        %462 = vmatpush1.msra.mxu0 %v430
        %463 = vmatprep.subr.mxu0 0.0
        %464 = vmatpush1.msra.mxu0 %v431
        %465 = vmatprep.subr.mxu0 0.0
        %466 = vmatpush1.msra.mxu0 %v432
        %467 = vmatprep.subr.mxu0 0.0
        %468 = vmatpush1.msra.mxu0 %v433
        %469 = vmatprep.subr.mxu0 0.0
        %470 = vmatpush1.msra.mxu0 %v434
        %471 = vmatprep.subr.mxu0 0.0
        %472 = vmatpush1.msra.mxu0 %v435
        %473 = vmatprep.subr.mxu0 0.0
        %474 = vmatpush1.msra.mxu0 %v436
        %475 = vmatprep.subr.mxu0 0.0
        %476 = vmatpush1.msra.mxu0 %v437
        %477 = vmatprep.subr.mxu0 0.0
        %478 = vmatpush1.msra.mxu0 0.0
        %479 = vmatprep.subr.mxu0 0.0
        %480 = vmatpush1.msra.mxu0 0.0
        %481 = vmatprep.subr.mxu0 0.0
        %482 = vmatpush1.msra.mxu0 0.0
        %483 = vmatprep.subr.mxu0 0.0
        %484 = vmatpush1.msra.mxu0 0.0
        %485 = vmatprep.subr.mxu0 0.0
        %486 = vmatpush1.msra.mxu0 0.0
        %487 = vmatprep.subr.mxu0 0.0
        %488 = vmatpush1.msra.mxu0 0.0
        %489 = vmatprep.subr.mxu0 0.0
        %490 = vmatpush1.msra.mxu0 0.0
        %491 = vmatprep.subr.mxu0 0.0
        %492 = vmatpush1.msra.mxu0 0.0
        %493 = vmatprep.subr.mxu0 0.0
        %494 = vmatpush1.msra.mxu0 0.0
        %495 = vmatprep.subr.mxu0 0.0
        %496 = vmatpush1.msra.mxu0 0.0
        %497 = vmatprep.subr.mxu0 0.0
        %498 = vmatpush1.msra.mxu0 0.0
        %499 = vmatprep.subr.mxu0 0.0
        %500 = vmatpush1.msra.mxu0 0.0
        %501 = vmatprep.subr.mxu0 0.0
        %502 = vmatpush1.msra.mxu0 0.0
        %503 = vmatprep.subr.mxu0 0.0
        %504 = vmatpush1.msra.mxu0 0.0
        %505 = vmatprep.subr.mxu0 0.0
        %506 = vmatpush1.msra.mxu0 0.0
        %507 = vmatprep.subr.mxu0 0.0
        %508 = vmatpush1.msra.mxu0 0.0
        %509 = vmatprep.mubr.f32.mxu0 0.0
        %510 = vmatmul.mubr.f32.gmra.mrb[0].mxu0 %v421
        %v511 = vpop.f32.mrb[0].mxu0
        %v512 = vadd.f32 %v443, %v511
        %v513 = vpop.f32.mrb[0].mxu0
        %514 = vdwg.mxu0
        %v515 = vadd.f32 %v512, %v323
        %v516 = vld [vmem:[%s5] sm:$0x1]
        %v517 = vld [vmem:[%s6] sm:$0x1]
        %518 = vadd.xlane.f32.xlu0 %v515
        %v519 = vpop.xlane.xlu0 %518
        %v520 = vmul.f32 %v519, 0.03125
        %v521 = vmul.f32 %v515, %v515
        %522 = vadd.xlane.f32.xlu0 %v521
        %v523 = vpop.xlane.xlu0 %522
        %v524 = vmul.f32 %v523, 0.03125
        %v525 = vmul.f32 %v520, %v520
        %v526 = vsub.f32 %v524, %v525
        %v527 = vmax.f32 %v526, 0.0
        %v528 = vsub.f32 %v515, %v520
        %v529 = vadd.f32 %v527, 1e-06
        %v530 = vrsqrt.pop %v529
        %v531 = vmul.f32 %v528, %v530
        %v533 = vlaneseq
        %v534 = vshrl.u32 %v533, 7
        %v535 = vsub.s32 0, %v534
        %v536 = vrot.slane %v516, %v535
        %v538 = vmul.f32 %v531, %v536
        %v540 = vlaneseq
        %v541 = vshrl.u32 %v540, 7
        %v542 = vsub.s32 0, %v541
        %v543 = vrot.slane %v517, %v542
        %v545 = vadd.f32 %v538, %v543
        %546 = vst [vmem:[%s322] sm:$0xff] %v545
        %s547 = sand.u32 %s185, 1
        %s548 = scalar_lea.sflag [#allocation4], %s547
        %s549 = sand.u32 %s185, 1
        %s550 = smul.addr %s549, 8
        %s551 = scalar_lea.vmem [#allocation8], %s550
        // Predicated region
        $region61: #{tpu_custom_call.1} parent=47 // pred_check
          %p552 = pneg %p195
        $region62: #{tpu_custom_call.1} parent=47 // pred_check_branch
          %554 = sbr.rel (%p552) target = $region64
        $region63: #{tpu_custom_call.1} parent=47 // pred_region
          %s556 = ssub.s32 128, 128
          %557 = vsyncadd %s548, %s556
          %s558 = smul.addr %s25, 128
          %s559 = scalar_lea.hbm %s7, %s558
          %s561 = sshll.u32 %s551, 4
          %s562 = int_to_ptr.vmem [resolvable:$true] %s561
          %564 = dma.vmem_to_hbm [thread:$0]  %s562, 128, %s559, %s548
        $region64: #{tpu_custom_call.1} parent=47 // pred_fallthru
          _
      $region48: #{tpu_custom_call.1} parent=5 // pred_fallthru
        _
      %p565 = scmp.le.s32.totalorder 2, %s20
      // Predicated region
      $region65: #{tpu_custom_call.1} parent=5 // pred_check
        %p566 = pneg %p565
      $region66: #{tpu_custom_call.1} parent=5 // pred_check_branch
        %568 = sbr.rel (%p566) target = $region68
      $region67: #{tpu_custom_call.1} parent=5 // pred_region
        %s569 = ssub.s32 %s20, 2
        // Predicated region
        $region69: #{tpu_custom_call.1} parent=67 // pred_check
          %p570 = pneg %p201
        $region70: #{tpu_custom_call.1} parent=67 // pred_check_branch
          %572 = sbr.rel (%p570) target = $region72
        $region71: #{tpu_custom_call.1} parent=67 // pred_region
          %s573 = sand.u32 %s186, 1
          %s574 = scalar_lea.sflag [#allocation4], %s573
          %s575 = sand.u32 %s186, 1
          %s576 = smul.addr %s575, 8
          %s577 = scalar_lea.vmem [#allocation8], %s576
          %578 = dma.done %s574, 128
        $region72: #{tpu_custom_call.1} parent=67 // pred_fallthru
          _
      $region68: #{tpu_custom_call.1} parent=5 // pred_fallthru
        _
    $region6: #{tpu_custom_call.1} parent=1 // loop_footer
      %s24 = sadd.s32 1, %s20
    $region7: #{tpu_custom_call.1} parent=1 // loop_footer_branch
      %19 = sbr.rel target = $region3
    $region8: #{tpu_custom_call.1} parent=1 // loop_exit
      _
    %579 = vsyncpa [#allocation3], 1
    %s580 = scalar_lea.sflag [#allocation3], 1
    %581 = vsyncpa %s580, 1
    %582 = vsyncpa [#allocation6], 1
    %583 = vsyncpa [#allocation4], 1
    %s584 = scalar_lea.sflag [#allocation4], 1
    %585 = vsyncpa %s584, 1

// kernel: tpu_custom_call.1
$region0: #{tpu_custom_call.1}
  #allocation0 [shape = 'u32[]', space=smem, size = 0x4, offset = 0x4, fixed_abs, tag = 'smem constant byte address 0x4 - core index']
  #allocation1 [shape = 'u32[144,128]{1,0:T(1,128)}', space=vmem, size = 0x12000, scoped, tag = 'internal scratch']
  %s0 = inlined_call_operand.hbm [shape: f32[16,128], index: 0, kind: input, shape index: {}]
  %s1 = inlined_call_operand.hbm [shape: f32[128,128], index: 1, kind: input, shape index: {}]
  %s2 = inlined_call_operand.vmem [shape: f32[1,128], index: 2, kind: input, shape index: {}]
  %s3 = inlined_call_operand.hbm [shape: f32[128,128], index: 3, kind: input, shape index: {}]
  %s4 = inlined_call_operand.vmem [shape: f32[1,128], index: 4, kind: input, shape index: {}]
  %s5 = inlined_call_operand.vmem [shape: f32[1,128], index: 5, kind: input, shape index: {}]
  %s6 = inlined_call_operand.vmem [shape: f32[1,128], index: 6, kind: input, shape index: {}]
  %s7 = inlined_call_operand.hbm [shape: f32[16,128], index: 7, kind: output, shape index: {}]
  %s8 = sld [smem:[#allocation0]]
  $region73: #{tpu_custom_call.1} parent=0
    _
  %s10 = ssub.s32 1, %s8
  %s11 = scalar_select 0, %s10, %s8
  $region1: #{tpu_custom_call.1} parent=0
    #allocation2 [shape = 'u8[8192]{0}', space=vmem, size = 0x2000, scoped, tag = 'input window, operand 0']
    #allocation3 [shape = 's32[2]{0}', space=sflag, size = 0x8, scoped, tag = 'scoped memory for tpu_custom_call.1']
    #allocation4 [shape = 's32[2]{0}', space=sflag, size = 0x8, scoped, tag = 'scoped memory for tpu_custom_call.1']
    #allocation5 [shape = 'u8[65536]{0}', space=vmem, size = 0x10000, scoped, tag = 'input window, operand 1, single buffered']
    #allocation6 [shape = 's32[1]{0}', space=sflag, size = 0x4, scoped, tag = 'scoped memory for tpu_custom_call.1']
    #allocation7 [shape = 'u8[65536]{0}', space=vmem, size = 0x10000, scoped, tag = 'input window, operand 3, single buffered']
    #allocation8 [shape = 'u8[8192]{0}', space=vmem, size = 0x2000, scoped, tag = 'output window, operand 0']
    %12 = vsyncpa [#allocation3], 0
    %s13 = scalar_lea.sflag [#allocation3], 1
    %14 = vsyncpa %s13, 0
    %15 = vsyncpa [#allocation6], 0
    %16 = vsyncpa [#allocation4], 0
    %s17 = scalar_lea.sflag [#allocation4], 1
    %18 = vsyncpa %s17, 0
    loop: start=0, step=1, limit=4
    $region2: #{tpu_custom_call.1} parent=1 // loop_pre_header
      _
    $region3: #{tpu_custom_call.1} parent=1 // loop_header
      %s20 = sphi 0, %s24
      %p21 = scmp.ge.s32.totalorder %s20, 4
      %s30 = sphi 0, %s32
      %s33 = sphi 0, %s30
      %s34 = sphi 0, %s33
      %s50 = sphi 0, %s34
      %s54 = sphi 0, %s54
      %s56 = sphi 0, %s54
      %s57 = sphi 0, %s56
      %s71 = sphi 0, %s57
      %s75 = sphi 0, %s75
      %s77 = sphi 0, %s75
      %s78 = sphi 0, %s77
      %s92 = sphi 0, %s78
      %s96 = sphi 0, %s96
      %s98 = sphi 0, %s96
      %s99 = sphi 0, %s98
      %s113 = sphi 0, %s99
      %s117 = sphi 0, %s117
      %s119 = sphi 0, %s117
      %s120 = sphi 0, %s119
      %s134 = sphi 0, %s120
      %s138 = sphi 0, %s138
      %s140 = sphi 0, %s138
      %s141 = sphi 0, %s140
      %s155 = sphi 0, %s141
      %s159 = sphi 0, %s159
      %s161 = sphi 0, %s159
      %s162 = sphi 0, %s161
      %s176 = sphi 0, %s162
      %s182 = sphi 0, %s184
      %s185 = sphi 0, %s182
      %s186 = sphi 0, %s185
      %s202 = sphi 0, %s186
    $region4: #{tpu_custom_call.1} parent=1 // loop_header_branch
      %23 = sbr.rel (%p21) target = $region8
    $region5: #{tpu_custom_call.1} parent=1 // loop_body
      %s25 = ssub.s32 %s20, 1
      %s26 = ssub.s32 %s20, 2
      %s27 = sadd.s32 %s20, 1
      %s28 = ssub.s32 %s20, %s27
      %p29 = scmp.eq.s32.totalorder %s28, 0
      %s31 = sadd.s32 %s30, 1
      %s32 = scalar_select %p29, %s30, %s31
      %p35 = pneg %p29
      %p36 = scmp.eq.s32.totalorder %s20, 1
      %p37 = por %p35, %p36
      %p38 = scmp.ne.s32.totalorder %s30, %s33
      %p39 = scmp.eq.s32.totalorder %s20, 0
      %p40 = por %p38, %p39
      %p41 = scmp.ne.s32.totalorder %s30, %s33
      %p42 = scmp.eq.s32.totalorder %s25, 1
      %p43 = por %p41, %p42
      %p44 = scmp.ne.s32.totalorder %s33, %s34
      %p45 = scmp.eq.s32.totalorder %s25, 0
      %p46 = por %p44, %p45
      %p47 = scmp.ne.s32.totalorder %s33, %s34
      %p48 = scmp.eq.s32.totalorder %s26, 1
      %p49 = por %p47, %p48
      %p51 = scmp.ne.s32.totalorder %s34, %s50
      %p52 = scmp.eq.s32.totalorder %s26, 0
      %p53 = por %p51, %p52
      %s55 = sadd.s32 %s54, 1
      %p58 = scmp.eq.s32.totalorder %s20, 1
      %p59 = scmp.ne.s32.totalorder %s54, %s56
      %p60 = scmp.eq.s32.totalorder %s20, 0
      %p61 = por %p59, %p60
      %p62 = scmp.ne.s32.totalorder %s54, %s56
      %p63 = scmp.eq.s32.totalorder %s25, 1
      %p64 = por %p62, %p63
      %p65 = scmp.ne.s32.totalorder %s56, %s57
      %p66 = scmp.eq.s32.totalorder %s25, 0
      %p67 = por %p65, %p66
      %p68 = scmp.ne.s32.totalorder %s56, %s57
      %p69 = scmp.eq.s32.totalorder %s26, 1
      %p70 = por %p68, %p69
      %p72 = scmp.ne.s32.totalorder %s57, %s71
      %p73 = scmp.eq.s32.totalorder %s26, 0
      %p74 = por %p72, %p73
      %s76 = sadd.s32 %s75, 1
      %p79 = scmp.eq.s32.totalorder %s20, 1
      %p80 = scmp.ne.s32.totalorder %s75, %s77
      %p81 = scmp.eq.s32.totalorder %s20, 0
      %p82 = por %p80, %p81
      %p83 = scmp.ne.s32.totalorder %s75, %s77
      %p84 = scmp.eq.s32.totalorder %s25, 1
      %p85 = por %p83, %p84
      %p86 = scmp.ne.s32.totalorder %s77, %s78
      %p87 = scmp.eq.s32.totalorder %s25, 0
      %p88 = por %p86, %p87
      %p89 = scmp.ne.s32.totalorder %s77, %s78
      %p90 = scmp.eq.s32.totalorder %s26, 1
      %p91 = por %p89, %p90
      %p93 = scmp.ne.s32.totalorder %s78, %s92
      %p94 = scmp.eq.s32.totalorder %s26, 0
      %p95 = por %p93, %p94
      %s97 = sadd.s32 %s96, 1
      %p100 = scmp.eq.s32.totalorder %s20, 1
      %p101 = scmp.ne.s32.totalorder %s96, %s98
      %p102 = scmp.eq.s32.totalorder %s20, 0
      %p103 = por %p101, %p102
      %p104 = scmp.ne.s32.totalorder %s96, %s98
      %p105 = scmp.eq.s32.totalorder %s25, 1
      %p106 = por %p104, %p105
      %p107 = scmp.ne.s32.totalorder %s98, %s99
      %p108 = scmp.eq.s32.totalorder %s25, 0
      %p109 = por %p107, %p108
      %p110 = scmp.ne.s32.totalorder %s98, %s99
      %p111 = scmp.eq.s32.totalorder %s26, 1
      %p112 = por %p110, %p111
      %p114 = scmp.ne.s32.totalorder %s99, %s113
      %p115 = scmp.eq.s32.totalorder %s26, 0
      %p116 = por %p114, %p115
      %s118 = sadd.s32 %s117, 1
      %p121 = scmp.eq.s32.totalorder %s20, 1
      %p122 = scmp.ne.s32.totalorder %s117, %s119
      %p123 = scmp.eq.s32.totalorder %s20, 0
      %p124 = por %p122, %p123
      %p125 = scmp.ne.s32.totalorder %s117, %s119
      %p126 = scmp.eq.s32.totalorder %s25, 1
      %p127 = por %p125, %p126
      %p128 = scmp.ne.s32.totalorder %s119, %s120
      %p129 = scmp.eq.s32.totalorder %s25, 0
      %p130 = por %p128, %p129
      %p131 = scmp.ne.s32.totalorder %s119, %s120
      %p132 = scmp.eq.s32.totalorder %s26, 1
      %p133 = por %p131, %p132
      %p135 = scmp.ne.s32.totalorder %s120, %s134
      %p136 = scmp.eq.s32.totalorder %s26, 0
      %p137 = por %p135, %p136
      %s139 = sadd.s32 %s138, 1
      %p142 = scmp.eq.s32.totalorder %s20, 1
      %p143 = scmp.ne.s32.totalorder %s138, %s140
      %p144 = scmp.eq.s32.totalorder %s20, 0
      %p145 = por %p143, %p144
      %p146 = scmp.ne.s32.totalorder %s138, %s140
      %p147 = scmp.eq.s32.totalorder %s25, 1
      %p148 = por %p146, %p147
      %p149 = scmp.ne.s32.totalorder %s140, %s141
      %p150 = scmp.eq.s32.totalorder %s25, 0
      %p151 = por %p149, %p150
      %p152 = scmp.ne.s32.totalorder %s140, %s141
      %p153 = scmp.eq.s32.totalorder %s26, 1
      %p154 = por %p152, %p153
      %p156 = scmp.ne.s32.totalorder %s141, %s155
      %p157 = scmp.eq.s32.totalorder %s26, 0
      %p158 = por %p156, %p157
      %s160 = sadd.s32 %s159, 1
      %p163 = scmp.eq.s32.totalorder %s20, 1
      %p164 = scmp.ne.s32.totalorder %s159, %s161
      %p165 = scmp.eq.s32.totalorder %s20, 0
      %p166 = por %p164, %p165
      %p167 = scmp.ne.s32.totalorder %s159, %s161
      %p168 = scmp.eq.s32.totalorder %s25, 1
      %p169 = por %p167, %p168
      %p170 = scmp.ne.s32.totalorder %s161, %s162
      %p171 = scmp.eq.s32.totalorder %s25, 0
      %p172 = por %p170, %p171
      %p173 = scmp.ne.s32.totalorder %s161, %s162
      %p174 = scmp.eq.s32.totalorder %s26, 1
      %p175 = por %p173, %p174
      %p177 = scmp.ne.s32.totalorder %s162, %s176
      %p178 = scmp.eq.s32.totalorder %s26, 0
      %p179 = por %p177, %p178
      %s180 = ssub.s32 %s20, %s27
      %p181 = scmp.eq.s32.totalorder %s180, 0
      %s183 = sadd.s32 %s182, 1
      %s184 = scalar_select %p181, %s182, %s183
      %p187 = pneg %p181
      %p188 = scmp.eq.s32.totalorder %s20, 1
      %p189 = por %p187, %p188
      %p190 = scmp.ne.s32.totalorder %s182, %s185
      %p191 = scmp.eq.s32.totalorder %s20, 0
      %p192 = por %p190, %p191
      %p193 = scmp.ne.s32.totalorder %s182, %s185
      %p194 = scmp.eq.s32.totalorder %s25, 1
      %p195 = por %p193, %p194
      %p196 = scmp.ne.s32.totalorder %s185, %s186
      %p197 = scmp.eq.s32.totalorder %s25, 0
      %p198 = por %p196, %p197
      %p199 = scmp.ne.s32.totalorder %s185, %s186
      %p200 = scmp.eq.s32.totalorder %s26, 1
      %p201 = por %p199, %p200
      %p203 = scmp.ne.s32.totalorder %s186, %s202
      %p204 = scmp.eq.s32.totalorder %s26, 0
      %p205 = por %p203, %p204
      %p206 = scmp.le.s32.totalorder 1, %s20
      %p207 = scmp.lt.s32.totalorder %s20, 3
      %p208 = pnand %p206, %p207
      %p209 = pneg %p208
      // Predicated region
      $region9: #{tpu_custom_call.1} parent=5 // pred_check
        _
      $region10: #{tpu_custom_call.1} parent=5 // pred_check_branch
        %211 = sbr.rel (%p208) target = $region12
      $region11: #{tpu_custom_call.1} parent=5 // pred_region
        %s212 = ssub.s32 %s20, 1
        // Predicated region
        $region13: #{tpu_custom_call.1} parent=11 // pred_check
          %p213 = pneg %p67
        $region14: #{tpu_custom_call.1} parent=11 // pred_check_branch
          %215 = sbr.rel (%p213) target = $region16
        $region15: #{tpu_custom_call.1} parent=11 // pred_region
          %s217 = ssub.s32 2048, 2048
          %218 = vsyncadd [#allocation6], %s217
          %s219 = sshll.u32 [#allocation5], 4
          %s220 = int_to_ptr.vmem [resolvable:$true] %s219
          %225 = dma.hbm_to_vmem [thread:$0]  %s1, 2048, %s220, [#allocation6], 128, 128, 8
        $region16: #{tpu_custom_call.1} parent=11 // pred_fallthru
          _
        // Predicated region
        $region17: #{tpu_custom_call.1} parent=11 // pred_check
          %p226 = pneg %p88
        $region18: #{tpu_custom_call.1} parent=11 // pred_check_branch
          %228 = sbr.rel (%p226) target = $region20
        $region19: #{tpu_custom_call.1} parent=11 // pred_region
          _
        $region20: #{tpu_custom_call.1} parent=11 // pred_fallthru
          _
        // Predicated region
        $region21: #{tpu_custom_call.1} parent=11 // pred_check
          %p229 = pneg %p109
        $region22: #{tpu_custom_call.1} parent=11 // pred_check_branch
          %231 = sbr.rel (%p229) target = $region24
        $region23: #{tpu_custom_call.1} parent=11 // pred_region
          %s233 = ssub.s32 2048, 2048
          %234 = vsyncadd [#allocation6], %s233
          %s235 = sshll.u32 [#allocation7], 4
          %s236 = int_to_ptr.vmem [resolvable:$true] %s235
          %241 = dma.hbm_to_vmem [thread:$0]  %s3, 2048, %s236, [#allocation6], 128, 128, 8
        $region24: #{tpu_custom_call.1} parent=11 // pred_fallthru
          _
        // Predicated region
        $region25: #{tpu_custom_call.1} parent=11 // pred_check
          %p242 = pneg %p130
        $region26: #{tpu_custom_call.1} parent=11 // pred_check_branch
          %244 = sbr.rel (%p242) target = $region28
        $region27: #{tpu_custom_call.1} parent=11 // pred_region
          _
        $region28: #{tpu_custom_call.1} parent=11 // pred_fallthru
          _
        // Predicated region
        $region29: #{tpu_custom_call.1} parent=11 // pred_check
          %p245 = pneg %p151
        $region30: #{tpu_custom_call.1} parent=11 // pred_check_branch
          %247 = sbr.rel (%p245) target = $region32
        $region31: #{tpu_custom_call.1} parent=11 // pred_region
          _
        $region32: #{tpu_custom_call.1} parent=11 // pred_fallthru
          _
        // Predicated region
        $region33: #{tpu_custom_call.1} parent=11 // pred_check
          %p248 = pneg %p172
        $region34: #{tpu_custom_call.1} parent=11 // pred_check_branch
          %250 = sbr.rel (%p248) target = $region36
        $region35: #{tpu_custom_call.1} parent=11 // pred_region
          _
        $region36: #{tpu_custom_call.1} parent=11 // pred_fallthru
          _
      $region12: #{tpu_custom_call.1} parent=5 // pred_fallthru
        _
      %p251 = scmp.lt.s32.totalorder %s20, 2
      // Predicated region
      $region37: #{tpu_custom_call.1} parent=5 // pred_check
        %p252 = pneg %p251
      $region38: #{tpu_custom_call.1} parent=5 // pred_check_branch
        %254 = sbr.rel (%p252) target = $region40
      $region39: #{tpu_custom_call.1} parent=5 // pred_region
        // Predicated region
        $region41: #{tpu_custom_call.1} parent=39 // pred_check
          %p255 = pneg %p40
        $region42: #{tpu_custom_call.1} parent=39 // pred_check_branch
          %257 = sbr.rel (%p255) target = $region44
        $region43: #{tpu_custom_call.1} parent=39 // pred_region
          %s258 = sand.u32 %s30, 1
          %s259 = scalar_lea.sflag [#allocation3], %s258
          %s260 = sand.u32 %s30, 1
          %s261 = smul.addr %s260, 8
          %s262 = scalar_lea.vmem [#allocation2], %s261
          %s264 = ssub.s32 128, 128
          %265 = vsyncadd %s259, %s264
          %s266 = smul.addr %s20, 128
          %s267 = scalar_lea.hbm %s0, %s266
          %s269 = sshll.u32 %s262, 4
          %s270 = int_to_ptr.vmem [resolvable:$true] %s269
          %272 = dma.hbm_to_vmem [thread:$0]  %s267, 128, %s270, %s259
        $region44: #{tpu_custom_call.1} parent=39 // pred_fallthru
          _
      $region40: #{tpu_custom_call.1} parent=5 // pred_fallthru
        _
      %p273 = scmp.le.s32.totalorder 1, %s20
      %p274 = scmp.lt.s32.totalorder %s20, 3
      %p275 = pnand %p273, %p274
      %p276 = pneg %p275
      // Predicated region
      $region45: #{tpu_custom_call.1} parent=5 // pred_check
        _
      $region46: #{tpu_custom_call.1} parent=5 // pred_check_branch
        %278 = sbr.rel (%p275) target = $region48
      $region47: #{tpu_custom_call.1} parent=5 // pred_region
        %s279 = ssub.s32 %s20, 1
        %s280 = sand.u32 %s33, 1
        %s281 = scalar_lea.sflag [#allocation3], %s280
        %s282 = sand.u32 %s33, 1
        %s283 = smul.addr %s282, 8
        %s284 = scalar_lea.vmem [#allocation2], %s283
        // Predicated region
        $region49: #{tpu_custom_call.1} parent=47 // pred_check
          %p285 = pneg %p46
        $region50: #{tpu_custom_call.1} parent=47 // pred_check_branch
          %287 = sbr.rel (%p285) target = $region52
        $region51: #{tpu_custom_call.1} parent=47 // pred_region
          %288 = dma.done %s281, 128
        $region52: #{tpu_custom_call.1} parent=47 // pred_fallthru
          _
        // Predicated region
        $region53: #{tpu_custom_call.1} parent=47 // pred_check
          %p289 = pneg %p67
        $region54: #{tpu_custom_call.1} parent=47 // pred_check_branch
          %291 = sbr.rel (%p289) target = $region56
        $region55: #{tpu_custom_call.1} parent=47 // pred_region
          %292 = dma.done [#allocation6], 2048
        $region56: #{tpu_custom_call.1} parent=47 // pred_fallthru
          _
        // Predicated region
        $region57: #{tpu_custom_call.1} parent=47 // pred_check
          %p293 = pneg %p109
        $region58: #{tpu_custom_call.1} parent=47 // pred_check_branch
          %295 = sbr.rel (%p293) target = $region60
        $region59: #{tpu_custom_call.1} parent=47 // pred_region
          %296 = dma.done [#allocation6], 2048
        $region60: #{tpu_custom_call.1} parent=47 // pred_fallthru
          _
        %s297 = sand.u32 %s33, 1
        %s298 = scalar_lea.sflag [#allocation3], %s297
        %s299 = sand.u32 %s33, 1
        %s300 = smul.addr %s299, 8
        %s301 = scalar_lea.vmem [#allocation2], %s300
        %p302 = pneg %p46
        %p303 = pneg %p43
        %p304 = pneg %p67
        %p305 = pneg %p64
        %p306 = pneg %p88
        %p307 = pneg %p85
        %p308 = pneg %p109
        %p309 = pneg %p106
        %p310 = pneg %p130
        %p311 = pneg %p127
        %p312 = pneg %p151
        %p313 = pneg %p148
        %p314 = pneg %p172
        %p315 = pneg %p169
        %p316 = pneg %p198
        %p317 = pneg %p195
        %s318 = sand.u32 %s185, 1
        %s319 = scalar_lea.sflag [#allocation4], %s318
        %s320 = sand.u32 %s185, 1
        %s321 = smul.addr %s320, 8
        %s322 = scalar_lea.vmem [#allocation8], %s321
        %v323 = vld [vmem:[%s284] sm:$0xff]
        %v324 = vld [vmem:[#allocation5] sm:$0xff]
        %v325 = vld [vmem:[#allocation5 + $0x8] sm:$0xff]
        %v326 = vld [vmem:[#allocation5 + $0x10] sm:$0xff]
        %v327 = vld [vmem:[#allocation5 + $0x18] sm:$0xff]
        %v328 = vld [vmem:[#allocation5 + $0x20] sm:$0xff]
        %v329 = vld [vmem:[#allocation5 + $0x28] sm:$0xff]
        %v330 = vld [vmem:[#allocation5 + $0x30] sm:$0xff]
        %v331 = vld [vmem:[#allocation5 + $0x38] sm:$0xff]
        %v332 = vld [vmem:[#allocation5 + $0x40] sm:$0xff]
        %v333 = vld [vmem:[#allocation5 + $0x48] sm:$0xff]
        %v334 = vld [vmem:[#allocation5 + $0x50] sm:$0xff]
        %v335 = vld [vmem:[#allocation5 + $0x58] sm:$0xff]
        %v336 = vld [vmem:[#allocation5 + $0x60] sm:$0xff]
        %v337 = vld [vmem:[#allocation5 + $0x68] sm:$0xff]
        %v338 = vld [vmem:[#allocation5 + $0x70] sm:$0xff]
        %v339 = vld [vmem:[#allocation5 + $0x78] sm:$0xff]
        %v340 = vld [vmem:[%s2] sm:$0x1]
        %v342 = vlaneseq
        %v343 = vshrl.u32 %v342, 7
        %v344 = vsub.s32 0, %v343
        %v345 = vrot.slane %v340, %v344
        %347 = vmatprep.subr.mxu0 0.0
        %348 = vmatpush1.msra.mxu0 %v324
        %349 = vmatprep.subr.mxu0 0.0
        %350 = vmatpush1.msra.mxu0 %v325
        %351 = vmatprep.subr.mxu0 0.0
        %352 = vmatpush1.msra.mxu0 %v326
        %353 = vmatprep.subr.mxu0 0.0
        %354 = vmatpush1.msra.mxu0 %v327
        %355 = vmatprep.subr.mxu0 0.0
        %356 = vmatpush1.msra.mxu0 %v328
        %357 = vmatprep.subr.mxu0 0.0
        %358 = vmatpush1.msra.mxu0 %v329
        %359 = vmatprep.subr.mxu0 0.0
        %360 = vmatpush1.msra.mxu0 %v330
        %361 = vmatprep.subr.mxu0 0.0
        %362 = vmatpush1.msra.mxu0 %v331
        %363 = vmatprep.subr.mxu0 0.0
        %364 = vmatpush1.msra.mxu0 %v332
        %365 = vmatprep.subr.mxu0 0.0
        %366 = vmatpush1.msra.mxu0 %v333
        %367 = vmatprep.subr.mxu0 0.0
        %368 = vmatpush1.msra.mxu0 %v334
        %369 = vmatprep.subr.mxu0 0.0
        %370 = vmatpush1.msra.mxu0 %v335
        %371 = vmatprep.subr.mxu0 0.0
        %372 = vmatpush1.msra.mxu0 %v336
        %373 = vmatprep.subr.mxu0 0.0
        %374 = vmatpush1.msra.mxu0 %v337
        %375 = vmatprep.subr.mxu0 0.0
        %376 = vmatpush1.msra.mxu0 %v338
        %377 = vmatprep.subr.mxu0 0.0
        %378 = vmatpush1.msra.mxu0 %v339
        %379 = vmatprep.subr.mxu0 0.0
        %380 = vmatpush1.msra.mxu0 0.0
        %381 = vmatprep.subr.mxu0 0.0
        %382 = vmatpush1.msra.mxu0 0.0
        %383 = vmatprep.subr.mxu0 0.0
        %384 = vmatpush1.msra.mxu0 0.0
        %385 = vmatprep.subr.mxu0 0.0
        %386 = vmatpush1.msra.mxu0 0.0
        %387 = vmatprep.subr.mxu0 0.0
        %388 = vmatpush1.msra.mxu0 0.0
        %389 = vmatprep.subr.mxu0 0.0
        %390 = vmatpush1.msra.mxu0 0.0
        %391 = vmatprep.subr.mxu0 0.0
        %392 = vmatpush1.msra.mxu0 0.0
        %393 = vmatprep.subr.mxu0 0.0
        %394 = vmatpush1.msra.mxu0 0.0
        %395 = vmatprep.subr.mxu0 0.0
        %396 = vmatpush1.msra.mxu0 0.0
        %397 = vmatprep.subr.mxu0 0.0
        %398 = vmatpush1.msra.mxu0 0.0
        %399 = vmatprep.subr.mxu0 0.0
        %400 = vmatpush1.msra.mxu0 0.0
        %401 = vmatprep.subr.mxu0 0.0
        %402 = vmatpush1.msra.mxu0 0.0
        %403 = vmatprep.subr.mxu0 0.0
        %404 = vmatpush1.msra.mxu0 0.0
        %405 = vmatprep.subr.mxu0 0.0
        %406 = vmatpush1.msra.mxu0 0.0
        %407 = vmatprep.subr.mxu0 0.0
        %408 = vmatpush1.msra.mxu0 0.0
        %409 = vmatprep.subr.mxu0 0.0
        %410 = vmatpush1.msra.mxu0 0.0
        %411 = vmatprep.mubr.f32.mxu0 0.0
        %412 = vmatmul.mubr.f32.gmra.mrb[0].mxu0 %v323
        %v413 = vpop.f32.mrb[0].mxu0
        %v414 = vadd.f32 %v345, %v413
        %v415 = vpop.f32.mrb[0].mxu0
        %416 = vdwg.mxu0
        %v417 = vmul.f32 %v414, 0.5
        %v418 = vmul.f32 %v414, 0.70710677
        %v419 = verf.f32.pop %v418
        %v420 = vadd.f32 %v419, 1.0
        %v421 = vmul.f32 %v417, %v420
        %v422 = vld [vmem:[#allocation7] sm:$0xff]
        %v423 = vld [vmem:[#allocation7 + $0x8] sm:$0xff]
        %v424 = vld [vmem:[#allocation7 + $0x10] sm:$0xff]
        %v425 = vld [vmem:[#allocation7 + $0x18] sm:$0xff]
        %v426 = vld [vmem:[#allocation7 + $0x20] sm:$0xff]
        %v427 = vld [vmem:[#allocation7 + $0x28] sm:$0xff]
        %v428 = vld [vmem:[#allocation7 + $0x30] sm:$0xff]
        %v429 = vld [vmem:[#allocation7 + $0x38] sm:$0xff]
        %v430 = vld [vmem:[#allocation7 + $0x40] sm:$0xff]
        %v431 = vld [vmem:[#allocation7 + $0x48] sm:$0xff]
        %v432 = vld [vmem:[#allocation7 + $0x50] sm:$0xff]
        %v433 = vld [vmem:[#allocation7 + $0x58] sm:$0xff]
        %v434 = vld [vmem:[#allocation7 + $0x60] sm:$0xff]
        %v435 = vld [vmem:[#allocation7 + $0x68] sm:$0xff]
        %v436 = vld [vmem:[#allocation7 + $0x70] sm:$0xff]
        %v437 = vld [vmem:[#allocation7 + $0x78] sm:$0xff]
        %v438 = vld [vmem:[%s4] sm:$0x1]
        %v440 = vlaneseq
        %v441 = vshrl.u32 %v440, 7
        %v442 = vsub.s32 0, %v441
        %v443 = vrot.slane %v438, %v442
        %445 = vmatprep.subr.mxu0 0.0
        %446 = vmatpush1.msra.mxu0 %v422
        %447 = vmatprep.subr.mxu0 0.0
        %448 = vmatpush1.msra.mxu0 %v423
        %449 = vmatprep.subr.mxu0 0.0
        %450 = vmatpush1.msra.mxu0 %v424
        %451 = vmatprep.subr.mxu0 0.0
        %452 = vmatpush1.msra.mxu0 %v425
        %453 = vmatprep.subr.mxu0 0.0
        %454 = vmatpush1.msra.mxu0 %v426
        %455 = vmatprep.subr.mxu0 0.0
        %456 = vmatpush1.msra.mxu0 %v427
        %457 = vmatprep.subr.mxu0 0.0
        %458 = vmatpush1.msra.mxu0 %v428
        %459 = vmatprep.subr.mxu0 0.0
        %460 = vmatpush1.msra.mxu0 %v429
        %461 = vmatprep.subr.mxu0 0.0
        %462 = vmatpush1.msra.mxu0 %v430
        %463 = vmatprep.subr.mxu0 0.0
        %464 = vmatpush1.msra.mxu0 %v431
        %465 = vmatprep.subr.mxu0 0.0
        %466 = vmatpush1.msra.mxu0 %v432
        %467 = vmatprep.subr.mxu0 0.0
        %468 = vmatpush1.msra.mxu0 %v433
        %469 = vmatprep.subr.mxu0 0.0
        %470 = vmatpush1.msra.mxu0 %v434
        %471 = vmatprep.subr.mxu0 0.0
        %472 = vmatpush1.msra.mxu0 %v435
        %473 = vmatprep.subr.mxu0 0.0
        %474 = vmatpush1.msra.mxu0 %v436
        %475 = vmatprep.subr.mxu0 0.0
        %476 = vmatpush1.msra.mxu0 %v437
        %477 = vmatprep.subr.mxu0 0.0
        %478 = vmatpush1.msra.mxu0 0.0
        %479 = vmatprep.subr.mxu0 0.0
        %480 = vmatpush1.msra.mxu0 0.0
        %481 = vmatprep.subr.mxu0 0.0
        %482 = vmatpush1.msra.mxu0 0.0
        %483 = vmatprep.subr.mxu0 0.0
        %484 = vmatpush1.msra.mxu0 0.0
        %485 = vmatprep.subr.mxu0 0.0
        %486 = vmatpush1.msra.mxu0 0.0
        %487 = vmatprep.subr.mxu0 0.0
        %488 = vmatpush1.msra.mxu0 0.0
        %489 = vmatprep.subr.mxu0 0.0
        %490 = vmatpush1.msra.mxu0 0.0
        %491 = vmatprep.subr.mxu0 0.0
        %492 = vmatpush1.msra.mxu0 0.0
        %493 = vmatprep.subr.mxu0 0.0
        %494 = vmatpush1.msra.mxu0 0.0
        %495 = vmatprep.subr.mxu0 0.0
        %496 = vmatpush1.msra.mxu0 0.0
        %497 = vmatprep.subr.mxu0 0.0
        %498 = vmatpush1.msra.mxu0 0.0
        %499 = vmatprep.subr.mxu0 0.0
        %500 = vmatpush1.msra.mxu0 0.0
        %501 = vmatprep.subr.mxu0 0.0
        %502 = vmatpush1.msra.mxu0 0.0
        %503 = vmatprep.subr.mxu0 0.0
        %504 = vmatpush1.msra.mxu0 0.0
        %505 = vmatprep.subr.mxu0 0.0
        %506 = vmatpush1.msra.mxu0 0.0
        %507 = vmatprep.subr.mxu0 0.0
        %508 = vmatpush1.msra.mxu0 0.0
        %509 = vmatprep.mubr.f32.mxu0 0.0
        %510 = vmatmul.mubr.f32.gmra.mrb[0].mxu0 %v421
        %v511 = vpop.f32.mrb[0].mxu0
        %v512 = vadd.f32 %v443, %v511
        %v513 = vpop.f32.mrb[0].mxu0
        %514 = vdwg.mxu0
        %v515 = vadd.f32 %v512, %v323
        %v516 = vld [vmem:[%s5] sm:$0x1]
        %v517 = vld [vmem:[%s6] sm:$0x1]
        %518 = vadd.xlane.f32.xlu0 %v515
        %v519 = vpop.xlane.xlu0 %518
        %v520 = vmul.f32 %v519, 0.03125
        %v521 = vmul.f32 %v515, %v515
        %522 = vadd.xlane.f32.xlu0 %v521
        %v523 = vpop.xlane.xlu0 %522
        %v524 = vmul.f32 %v523, 0.03125
        %v525 = vmul.f32 %v520, %v520
        %v526 = vsub.f32 %v524, %v525
        %v527 = vmax.f32 %v526, 0.0
        %v528 = vsub.f32 %v515, %v520
        %v529 = vadd.f32 %v527, 1e-06
        %v530 = vrsqrt.pop %v529
        %v531 = vmul.f32 %v528, %v530
        %v533 = vlaneseq
        %v534 = vshrl.u32 %v533, 7
        %v535 = vsub.s32 0, %v534
        %v536 = vrot.slane %v516, %v535
        %v538 = vmul.f32 %v531, %v536
        %v540 = vlaneseq
        %v541 = vshrl.u32 %v540, 7
        %v542 = vsub.s32 0, %v541
        %v543 = vrot.slane %v517, %v542
        %v545 = vadd.f32 %v538, %v543
        %546 = vst [vmem:[%s322] sm:$0xff] %v545
        %s547 = sand.u32 %s185, 1
        %s548 = scalar_lea.sflag [#allocation4], %s547
        %s549 = sand.u32 %s185, 1
        %s550 = smul.addr %s549, 8
        %s551 = scalar_lea.vmem [#allocation8], %s550
        // Predicated region
        $region61: #{tpu_custom_call.1} parent=47 // pred_check
          %p552 = pneg %p195
        $region62: #{tpu_custom_call.1} parent=47 // pred_check_branch
          %554 = sbr.rel (%p552) target = $region64
        $region63: #{tpu_custom_call.1} parent=47 // pred_region
          %s556 = ssub.s32 128, 128
          %557 = vsyncadd %s548, %s556
          %s558 = smul.addr %s25, 128
          %s559 = scalar_lea.hbm %s7, %s558
          %s561 = sshll.u32 %s551, 4
          %s562 = int_to_ptr.vmem [resolvable:$true] %s561
          %564 = dma.vmem_to_hbm [thread:$0]  %s562, 128, %s559, %s548
        $region64: #{tpu_custom_call.1} parent=47 // pred_fallthru
          _
      $region48: #{tpu_custom_call.1} parent=5 // pred_fallthru
        _
      %p565 = scmp.le.s32.totalorder 2, %s20
      // Predicated region
      $region65: #{tpu_custom_call.1} parent=5 // pred_check
        %p566 = pneg %p565
      $region66: #{tpu_custom_call.1} parent=5 // pred_check_branch
        %568 = sbr.rel (%p566) target = $region68
      $region67: #{tpu_custom_call.1} parent=5 // pred_region
        %s569 = ssub.s32 %s20, 2
        // Predicated region
        $region69: #{tpu_custom_call.1} parent=67 // pred_check
          %p570 = pneg %p201
        $region70: #{tpu_custom_call.1} parent=67 // pred_check_branch
          %572 = sbr.rel (%p570) target = $region72
        $region71: #{tpu_custom_call.1} parent=67 // pred_region
          %s573 = sand.u32 %s186, 1
          %s574 = scalar_lea.sflag [#allocation4], %s573
          %s575 = sand.u32 %s186, 1
          %s576 = smul.addr %s575, 8
          %s577 = scalar_lea.vmem [#allocation8], %s576
          %578 = dma.done %s574, 128
        $region72: #{tpu_custom_call.1} parent=67 // pred_fallthru
          _
      $region68: #{tpu_custom_call.1} parent=5 // pred_fallthru
        _
    $region6: #{tpu_custom_call.1} parent=1 // loop_footer
      %s24 = sadd.s32 1, %s20
    $region7: #{tpu_custom_call.1} parent=1 // loop_footer_branch
      %19 = sbr.rel target = $region3
    $region8: #{tpu_custom_call.1} parent=1 // loop_exit
      _
    %579 = vsyncpa [#allocation3], 1
    %s580 = scalar_lea.sflag [#allocation3], 1
    %581 = vsyncpa %s580, 1
    %582 = vsyncpa [#allocation6], 1
    %583 = vsyncpa [#allocation4], 1
    %s584 = scalar_lea.sflag [#allocation4], 1
    %585 = vsyncpa %s584, 1

</llo_original>
